<compile_context>
chip_gen: v5e
topology: v5e:2x2
jax: 0.10.0
libtpu: 0.0.40
codegen_flags: <defaults>
</compile_context>

<pallas_src>
import jax
import jax.numpy as jnp
from jax import lax
from jax.experimental import pallas as pl
from jax.experimental.pallas import tpu as pltpu


def rlif_kernel(cur1_ref, w_ref, b_ref, beta_ref, thr_ref,
                cur_rec_ref, spk_rec_ref, mem5_rec_ref, s2sum_ref,
                m3_buf_ref):
    f32 = jnp.float32
    bf16 = jnp.bfloat16
    heavi = lambda u: (u > 0).astype(f32)      # snntorch fire() forward

    T, B, H = cur1_ref.shape
    NO = cur_rec_ref.shape[1]

    # ---- loop-invariant parameter prep (hoisted; traced exactly once) ----
    # bf16 weights for the serial-path dots: the spike LHS is exact 0/1 in
    # bf16, accumulation stays f32 via preferred_element_type.  w4/w5 stay
    # f32 (their LHS are membranes, and they're off the serial chain now).
    w2b = w_ref[0].astype(bf16)
    w3b = w_ref[1].astype(bf16)
    w4 = w_ref[2]
    w5 = w_ref[3]

    def bc(row):                               # (1,H) -> (B,H), done ONCE
        return jnp.broadcast_to(row, (B, H))

    b2, b3 = bc(b_ref[0:1]), bc(b_ref[1:2])
    b4row, b5row = b_ref[2:3], b_ref[3:4]      # one-time broadcast post-loop
    beta1, beta2, beta3 = bc(beta_ref[0:1]), bc(beta_ref[1:2]), bc(beta_ref[2:3])
    beta4, beta5 = bc(beta_ref[3:4]), bc(beta_ref[4:5])
    thr1, thr2, thr3, thr5 = (bc(thr_ref[0:1]), bc(thr_ref[1:2]),
                              bc(thr_ref[2:3]), bc(thr_ref[4:5]))

    # ---- serial recurrence: only the spiking layers 1..3 ----
    def step(t, carry):
        m1, m2, m3, s1, s2, s3, s2acc = carry

        cur1 = cur1_ref[t]                     # (B, H)  fc1(x_t)+b1, precomputed

        # reset_k(t) == spike_k(t-1): same heaviside of the same membrane with
        # the same time-invariant threshold; V*spk == 0 (see header).
        m1 = beta1 * m1 + cur1 - s1 * thr1
        s1 = heavi(m1 - thr1)

        cur2 = jnp.dot(s1.astype(bf16), w2b, preferred_element_type=f32) + b2
        m2 = beta2 * m2 + cur2 - s2 * thr2
        s2 = heavi(m2 - thr2)

        cur3 = jnp.dot(s2.astype(bf16), w3b, preferred_element_type=f32) + b3
        m3 = beta3 * m3 + cur3 - s3 * thr3
        s3 = heavi(m3 - thr3)                  # only used as next step's reset

        row = pl.multiple_of(t * B, B)
        m3_buf_ref[pl.ds(row, B), :] = m3      # record for the batched fc4 dot

        return (m1, m2, m3, s1, s2, s3, s2acc + s2)

    z = jnp.zeros((B, H), f32)
    carry = lax.fori_loop(0, T, step, (z, z, z, z, z, z, z), unroll=True)
    # spk_23 partial sum stays lane-parallel (B,H); reduced in the wrapper.
    s2sum_ref[...] = carry[6]

    # ---- hoisted fc4/lif4 + fc5/lif5: 2 batched dots + 2 cheap VPU scans ----
    m3_2d = m3_buf_ref[...]                                        # (T*B, H)
    cur4 = jnp.dot(m3_2d, w4, preferred_element_type=f32) + b4row  # (T*B, H)

    m4 = z
    m4_rows = []
    for t in range(T):                         # reset='none' linear recurrence
        m4 = beta4 * m4 + cur4[t * B:(t + 1) * B, :]
        m4_rows.append(m4)
    m4_2d = jnp.concatenate(m4_rows, axis=0)                       # (T*B, H)

    cur5 = jnp.dot(m4_2d, w5, preferred_element_type=f32) + b5row  # (T*B, NO)
    cur_rec_ref[...] = cur5                    # 'current' record, one store

    m5 = jnp.zeros((B, NO), f32)
    m5_rows, s5_rows = [], []
    for t in range(T):                         # reset='none'
        m5 = beta5 * m5 + cur5[t * B:(t + 1) * B, :]
        m5_rows.append(m5)
        s5_rows.append(heavi(m5 - thr5))
    mem5_rec_ref[...] = jnp.concatenate(m5_rows, axis=0)
    spk_rec_ref[...] = jnp.concatenate(s5_rows, axis=0)


def rlif_forward(x, w1, b1, wstack, bstack, beta, thr):
    T, B, _ = x.shape
    H = w1.shape[1]
    NO = wstack.shape[2]

    # Grid-invariant prep hoisted out of the kernel:
    #  * fc1 has no recurrence -> precompute its output for all timesteps.
    #  * snntorch clamps beta to [0, 1] once.
    cur1 = (x * w1 + b1).astype(jnp.float32)         # (T,B,1)*(1,H) -> (T,B,H)
    beta_c = jnp.clip(beta, 0.0, 1.0)

    vmem = lambda: pl.BlockSpec(memory_space=pltpu.MemorySpace.VMEM)

    out_shapes = (
        jax.ShapeDtypeStruct((T * B, NO), jnp.float32),   # 'current' (fc5 out)
        jax.ShapeDtypeStruct((T * B, NO), jnp.float32),   # layer-5 spikes
        jax.ShapeDtypeStruct((T * B, NO), jnp.float32),   # layer-5 membrane
        jax.ShapeDtypeStruct((B, H), jnp.float32),        # sum_t layer-2 spikes
    )

    # Single invocation (no grid): all operands/outputs live whole in VMEM
    # (total footprint < 200 KiB, far under any generation's scoped limit).
    cur, spk, mem5, s2sum = pl.pallas_call(
        rlif_kernel,
        out_shape=out_shapes,
        in_specs=[vmem() for _ in range(5)],
        out_specs=tuple(vmem() for _ in range(4)),
        scratch_shapes=[pltpu.VMEM((T * B, H), jnp.float32)],
    )(cur1, wstack, bstack, beta_c, thr)

    cur = cur.reshape(T, B, NO)
    spk = spk.reshape(T, B, NO)
    mem5 = mem5.reshape(T, B, NO)
    return {
        "current": cur,
        "membrane_potential": jnp.mean(mem5, axis=-1, keepdims=True),
        "spikes": spk,
        "spk_23": jnp.sum(s2sum) / (T * B * H),
    }


def init_params(key, hidden, num_output):
    # The reference broadcasts hidden-sized beta/threshold against fc5's output,
    # which only works when num_output == hidden; keep that constraint.
    assert num_output == hidden
    ks = jax.random.split(key, 5)

    def linear(k, fan_in, fan_out):
        bound = 1.0 / float(fan_in) ** 0.5
        kw, kb = jax.random.split(k)
        w = jax.random.uniform(kw, (fan_in, fan_out), jnp.float32, -bound, bound)
        b = jax.random.uniform(kb, (fan_out,), jnp.float32, -bound, bound)
        return w, b

    w1, b1 = linear(ks[0], 1, hidden)
    w2, b2 = linear(ks[1], hidden, hidden)
    w3, b3 = linear(ks[2], hidden, hidden)
    w4, b4 = linear(ks[3], hidden, hidden)
    w5, b5 = linear(ks[4], hidden, num_output)

    wstack = jnp.stack([w2, w3, w4, w5], axis=0)       # (4, H, H)
    bstack = jnp.stack([b2, b3, b4, b5], axis=0)       # (4, H)
    beta = jnp.full((5, hidden), 0.1, jnp.float32)
    thr = jnp.full((5, hidden), 0.1, jnp.float32)
    # V (recurrent one-to-one weight, 0.1) is unused in the forward: the
    # reference feeds never-updated zero spikes to every RLeaky, so V*spk == 0.
    return w1, b1, wstack, bstack, beta, thr


if __name__ == "__main__":
    T, B, H, NO = 8, 8, 32, 32      # B=8 fills all 8 vreg sublanes
    key = jax.random.PRNGKey(0)
    kx, kp = jax.random.split(key)
    x = jax.random.normal(kx, (T, B, 1), jnp.float32)
    w1, b1, wstack, bstack, beta, thr = init_params(kp, H, NO)

    fwd = jax.jit(rlif_forward)
    out = jax.block_until_ready(fwd(x, w1, b1, wstack, bstack, beta, thr))

    assert out["current"].shape == (T, B, NO)
    assert out["membrane_potential"].shape == (T, B, 1)
    assert out["spikes"].shape == (T, B, NO)
    assert out["spk_23"].shape == ()
    print("KERNEL_OK")
</pallas_src>

<mosaic_0001>
module attributes {stable_mosaic.version = 11 : i64} {
  func.func @rlif_kernel(%arg0: memref<8x8x32xf32, #tpu.memory_space<vmem>>, %arg1: memref<4x32x32xf32, #tpu.memory_space<vmem>>, %arg2: memref<4x32xf32, #tpu.memory_space<vmem>>, %arg3: memref<5x32xf32, #tpu.memory_space<vmem>>, %arg4: memref<5x32xf32, #tpu.memory_space<vmem>>, %arg5: memref<64x32xf32, #tpu.memory_space<vmem>>, %arg6: memref<64x32xf32, #tpu.memory_space<vmem>>, %arg7: memref<64x32xf32, #tpu.memory_space<vmem>>, %arg8: memref<8x32xf32, #tpu.memory_space<vmem>>, %arg9: memref<64x32xf32, #tpu.memory_space<vmem>>) attributes {dimension_semantics = [], scalar_prefetch = 0 : i64, scratch_operands = 1 : i64, tpu.core_type = #tpu.core_type<tc>} {
    %c0 = arith.constant 0 : index
    %c0_0 = arith.constant 0 : index
    %c0_1 = arith.constant 0 : index
    %0 = vector.load %arg1[%c0, %c0_0, %c0_1] : memref<4x32x32xf32, #tpu.memory_space<vmem>>, vector<1x32x32xf32>
    %1 = vector.shape_cast %0 : vector<1x32x32xf32> to vector<32x32xf32>
    %2 = arith.truncf %1 : vector<32x32xf32> to vector<32x32xbf16>
    %c1 = arith.constant 1 : index
    %c0_2 = arith.constant 0 : index
    %c0_3 = arith.constant 0 : index
    %3 = vector.load %arg1[%c1, %c0_2, %c0_3] : memref<4x32x32xf32, #tpu.memory_space<vmem>>, vector<1x32x32xf32>
    %4 = vector.shape_cast %3 : vector<1x32x32xf32> to vector<32x32xf32>
    %5 = arith.truncf %4 : vector<32x32xf32> to vector<32x32xbf16>
    %c2 = arith.constant 2 : index
    %c0_4 = arith.constant 0 : index
    %c0_5 = arith.constant 0 : index
    %6 = vector.load %arg1[%c2, %c0_4, %c0_5] : memref<4x32x32xf32, #tpu.memory_space<vmem>>, vector<1x32x32xf32>
    %7 = vector.shape_cast %6 : vector<1x32x32xf32> to vector<32x32xf32>
    %c3 = arith.constant 3 : index
    %c0_6 = arith.constant 0 : index
    %c0_7 = arith.constant 0 : index
    %8 = vector.load %arg1[%c3, %c0_6, %c0_7] : memref<4x32x32xf32, #tpu.memory_space<vmem>>, vector<1x32x32xf32>
    %9 = vector.shape_cast %8 : vector<1x32x32xf32> to vector<32x32xf32>
    %c0_8 = arith.constant 0 : index
    %c0_9 = arith.constant 0 : index
    %10 = vector.load %arg2[%c0_8, %c0_9] : memref<4x32xf32, #tpu.memory_space<vmem>>, vector<1x32xf32>
    %11 = vector.shape_cast %10 : vector<1x32xf32> to vector<1x32xf32>
    %12 = vector.broadcast %11 : vector<1x32xf32> to vector<8x32xf32>
    %c1_10 = arith.constant 1 : index
    %c0_11 = arith.constant 0 : index
    %13 = vector.load %arg2[%c1_10, %c0_11] : memref<4x32xf32, #tpu.memory_space<vmem>>, vector<1x32xf32>
    %14 = vector.shape_cast %13 : vector<1x32xf32> to vector<1x32xf32>
    %15 = vector.broadcast %14 : vector<1x32xf32> to vector<8x32xf32>
    %c2_12 = arith.constant 2 : index
    %c0_13 = arith.constant 0 : index
    %16 = vector.load %arg2[%c2_12, %c0_13] : memref<4x32xf32, #tpu.memory_space<vmem>>, vector<1x32xf32>
    %c3_14 = arith.constant 3 : index
    %c0_15 = arith.constant 0 : index
    %17 = vector.load %arg2[%c3_14, %c0_15] : memref<4x32xf32, #tpu.memory_space<vmem>>, vector<1x32xf32>
    %c0_16 = arith.constant 0 : index
    %c0_17 = arith.constant 0 : index
    %18 = vector.load %arg3[%c0_16, %c0_17] : memref<5x32xf32, #tpu.memory_space<vmem>>, vector<1x32xf32>
    %19 = vector.shape_cast %18 : vector<1x32xf32> to vector<1x32xf32>
    %20 = vector.broadcast %19 : vector<1x32xf32> to vector<8x32xf32>
    %c1_18 = arith.constant 1 : index
    %c0_19 = arith.constant 0 : index
    %21 = vector.load %arg3[%c1_18, %c0_19] : memref<5x32xf32, #tpu.memory_space<vmem>>, vector<1x32xf32>
    %22 = vector.shape_cast %21 : vector<1x32xf32> to vector<1x32xf32>
    %23 = vector.broadcast %22 : vector<1x32xf32> to vector<8x32xf32>
    %c2_20 = arith.constant 2 : index
    %c0_21 = arith.constant 0 : index
    %24 = vector.load %arg3[%c2_20, %c0_21] : memref<5x32xf32, #tpu.memory_space<vmem>>, vector<1x32xf32>
    %25 = vector.shape_cast %24 : vector<1x32xf32> to vector<1x32xf32>
    %26 = vector.broadcast %25 : vector<1x32xf32> to vector<8x32xf32>
    %c3_22 = arith.constant 3 : index
    %c0_23 = arith.constant 0 : index
    %27 = vector.load %arg3[%c3_22, %c0_23] : memref<5x32xf32, #tpu.memory_space<vmem>>, vector<1x32xf32>
    %28 = vector.shape_cast %27 : vector<1x32xf32> to vector<1x32xf32>
    %29 = vector.broadcast %28 : vector<1x32xf32> to vector<8x32xf32>
    %c4 = arith.constant 4 : index
    %c0_24 = arith.constant 0 : index
    %30 = vector.load %arg3[%c4, %c0_24] : memref<5x32xf32, #tpu.memory_space<vmem>>, vector<1x32xf32>
    %31 = vector.shape_cast %30 : vector<1x32xf32> to vector<1x32xf32>
    %32 = vector.broadcast %31 : vector<1x32xf32> to vector<8x32xf32>
    %c0_25 = arith.constant 0 : index
    %c0_26 = arith.constant 0 : index
    %33 = vector.load %arg4[%c0_25, %c0_26] : memref<5x32xf32, #tpu.memory_space<vmem>>, vector<1x32xf32>
    %34 = vector.shape_cast %33 : vector<1x32xf32> to vector<1x32xf32>
    %35 = vector.broadcast %34 : vector<1x32xf32> to vector<8x32xf32>
    %c1_27 = arith.constant 1 : index
    %c0_28 = arith.constant 0 : index
    %36 = vector.load %arg4[%c1_27, %c0_28] : memref<5x32xf32, #tpu.memory_space<vmem>>, vector<1x32xf32>
    %37 = vector.shape_cast %36 : vector<1x32xf32> to vector<1x32xf32>
    %38 = vector.broadcast %37 : vector<1x32xf32> to vector<8x32xf32>
    %c2_29 = arith.constant 2 : index
    %c0_30 = arith.constant 0 : index
    %39 = vector.load %arg4[%c2_29, %c0_30] : memref<5x32xf32, #tpu.memory_space<vmem>>, vector<1x32xf32>
    %40 = vector.shape_cast %39 : vector<1x32xf32> to vector<1x32xf32>
    %41 = vector.broadcast %40 : vector<1x32xf32> to vector<8x32xf32>
    %c4_31 = arith.constant 4 : index
    %c0_32 = arith.constant 0 : index
    %42 = vector.load %arg4[%c4_31, %c0_32] : memref<5x32xf32, #tpu.memory_space<vmem>>, vector<1x32xf32>
    %43 = vector.shape_cast %42 : vector<1x32xf32> to vector<1x32xf32>
    %44 = vector.broadcast %43 : vector<1x32xf32> to vector<8x32xf32>
    %cst = arith.constant 0.000000e+00 : f32
    %45 = vector.broadcast %cst : f32 to vector<8x32xf32>
    %c0_i32 = arith.constant 0 : i32
    %46 = arith.index_cast %c0_i32 : i32 to index
    %c0_33 = arith.constant 0 : index
    %c0_34 = arith.constant 0 : index
    %47 = vector.load %arg0[%46, %c0_33, %c0_34] : memref<8x8x32xf32, #tpu.memory_space<vmem>>, vector<1x8x32xf32>
    %48 = vector.shape_cast %47 : vector<1x8x32xf32> to vector<8x32xf32>
    %49 = arith.mulf %20, %45 : vector<8x32xf32>
    %50 = arith.addf %49, %48 : vector<8x32xf32>
    %51 = arith.mulf %45, %35 : vector<8x32xf32>
    %52 = arith.subf %50, %51 : vector<8x32xf32>
    %53 = arith.subf %52, %35 : vector<8x32xf32>
    %cst_35 = arith.constant 0.000000e+00 : f32
    %54 = vector.broadcast %cst_35 : f32 to vector<8x32xf32>
    %55 = arith.cmpf ogt, %53, %54 : vector<8x32xf32>
    %56 = arith.extui %55 : vector<8x32xi1> to vector<8x32xi32>
    %57 = arith.sitofp %56 : vector<8x32xi32> to vector<8x32xf32>
    %58 = arith.truncf %57 : vector<8x32xf32> to vector<8x32xbf16>
    %cst_36 = arith.constant dense<0.000000e+00> : vector<8x32xf32>
    %59 = tpu.matmul %58, %2, %cst_36 {dimension_numbers = #tpu.dot_dimension_numbers<[1], [0], [0], [1], [0, 0, 1, 1], [], []>} : vector<8x32xbf16>, vector<32x32xbf16>, vector<8x32xf32> -> vector<8x32xf32>
    %60 = arith.addf %59, %12 : vector<8x32xf32>
    %61 = arith.mulf %23, %45 : vector<8x32xf32>
    %62 = arith.addf %61, %60 : vector<8x32xf32>
    %63 = arith.mulf %45, %38 : vector<8x32xf32>
    %64 = arith.subf %62, %63 : vector<8x32xf32>
    %65 = arith.subf %64, %38 : vector<8x32xf32>
    %cst_37 = arith.constant 0.000000e+00 : f32
    %66 = vector.broadcast %cst_37 : f32 to vector<8x32xf32>
    %67 = arith.cmpf ogt, %65, %66 : vector<8x32xf32>
    %68 = arith.extui %67 : vector<8x32xi1> to vector<8x32xi32>
    %69 = arith.sitofp %68 : vector<8x32xi32> to vector<8x32xf32>
    %70 = arith.truncf %69 : vector<8x32xf32> to vector<8x32xbf16>
    %cst_38 = arith.constant dense<0.000000e+00> : vector<8x32xf32>
    %71 = tpu.matmul %70, %5, %cst_38 {dimension_numbers = #tpu.dot_dimension_numbers<[1], [0], [0], [1], [0, 0, 1, 1], [], []>} : vector<8x32xbf16>, vector<32x32xbf16>, vector<8x32xf32> -> vector<8x32xf32>
    %72 = arith.addf %71, %15 : vector<8x32xf32>
    %73 = arith.mulf %26, %45 : vector<8x32xf32>
    %74 = arith.addf %73, %72 : vector<8x32xf32>
    %75 = arith.mulf %45, %41 : vector<8x32xf32>
    %76 = arith.subf %74, %75 : vector<8x32xf32>
    %77 = arith.subf %76, %41 : vector<8x32xf32>
    %cst_39 = arith.constant 0.000000e+00 : f32
    %78 = vector.broadcast %cst_39 : f32 to vector<8x32xf32>
    %79 = arith.cmpf ogt, %77, %78 : vector<8x32xf32>
    %80 = arith.extui %79 : vector<8x32xi1> to vector<8x32xi32>
    %81 = arith.sitofp %80 : vector<8x32xi32> to vector<8x32xf32>
    %c8_i32 = arith.constant 8 : i32
    %82 = arith.muli %c0_i32, %c8_i32 : i32
    %83 = tpu.assume_multiple %82, 8 : i32
    %84 = arith.index_cast %83 : i32 to index
    %c0_40 = arith.constant 0 : index
    %85 = vector.load %arg9[%84, %c0_40] : memref<64x32xf32, #tpu.memory_space<vmem>>, vector<8x32xf32>
    tpu.vector_store %arg9[%84, %c0_40], %76 {strides = array<i32>} : memref<64x32xf32, #tpu.memory_space<vmem>>, vector<8x32xf32>,
    %86 = arith.addf %45, %69 : vector<8x32xf32>
    %c1_i32 = arith.constant 1 : i32
    %87 = arith.index_cast %c1_i32 : i32 to index
    %c0_41 = arith.constant 0 : index
    %c0_42 = arith.constant 0 : index
    %88 = vector.load %arg0[%87, %c0_41, %c0_42] : memref<8x8x32xf32, #tpu.memory_space<vmem>>, vector<1x8x32xf32>
    %89 = vector.shape_cast %88 : vector<1x8x32xf32> to vector<8x32xf32>
    %90 = arith.mulf %20, %52 : vector<8x32xf32>
    %91 = arith.addf %90, %89 : vector<8x32xf32>
    %92 = arith.mulf %57, %35 : vector<8x32xf32>
    %93 = arith.subf %91, %92 : vector<8x32xf32>
    %94 = arith.subf %93, %35 : vector<8x32xf32>
    %cst_43 = arith.constant 0.000000e+00 : f32
    %95 = vector.broadcast %cst_43 : f32 to vector<8x32xf32>
    %96 = arith.cmpf ogt, %94, %95 : vector<8x32xf32>
    %97 = arith.extui %96 : vector<8x32xi1> to vector<8x32xi32>
    %98 = arith.sitofp %97 : vector<8x32xi32> to vector<8x32xf32>
    %99 = arith.truncf %98 : vector<8x32xf32> to vector<8x32xbf16>
    %cst_44 = arith.constant dense<0.000000e+00> : vector<8x32xf32>
    %100 = tpu.matmul %99, %2, %cst_44 {dimension_numbers = #tpu.dot_dimension_numbers<[1], [0], [0], [1], [0, 0, 1, 1], [], []>} : vector<8x32xbf16>, vector<32x32xbf16>, vector<8x32xf32> -> vector<8x32xf32>
    %101 = arith.addf %100, %12 : vector<8x32xf32>
    %102 = arith.mulf %23, %64 : vector<8x32xf32>
    %103 = arith.addf %102, %101 : vector<8x32xf32>
    %104 = arith.mulf %69, %38 : vector<8x32xf32>
    %105 = arith.subf %103, %104 : vector<8x32xf32>
    %106 = arith.subf %105, %38 : vector<8x32xf32>
    %cst_45 = arith.constant 0.000000e+00 : f32
    %107 = vector.broadcast %cst_45 : f32 to vector<8x32xf32>
    %108 = arith.cmpf ogt, %106, %107 : vector<8x32xf32>
    %109 = arith.extui %108 : vector<8x32xi1> to vector<8x32xi32>
    %110 = arith.sitofp %109 : vector<8x32xi32> to vector<8x32xf32>
    %111 = arith.truncf %110 : vector<8x32xf32> to vector<8x32xbf16>
    %cst_46 = arith.constant dense<0.000000e+00> : vector<8x32xf32>
    %112 = tpu.matmul %111, %5, %cst_46 {dimension_numbers = #tpu.dot_dimension_numbers<[1], [0], [0], [1], [0, 0, 1, 1], [], []>} : vector<8x32xbf16>, vector<32x32xbf16>, vector<8x32xf32> -> vector<8x32xf32>
    %113 = arith.addf %112, %15 : vector<8x32xf32>
    %114 = arith.mulf %26, %76 : vector<8x32xf32>
    %115 = arith.addf %114, %113 : vector<8x32xf32>
    %116 = arith.mulf %81, %41 : vector<8x32xf32>
    %117 = arith.subf %115, %116 : vector<8x32xf32>
    %118 = arith.subf %117, %41 : vector<8x32xf32>
    %cst_47 = arith.constant 0.000000e+00 : f32
    %119 = vector.broadcast %cst_47 : f32 to vector<8x32xf32>
    %120 = arith.cmpf ogt, %118, %119 : vector<8x32xf32>
    %121 = arith.extui %120 : vector<8x32xi1> to vector<8x32xi32>
    %122 = arith.sitofp %121 : vector<8x32xi32> to vector<8x32xf32>
    %c8_i32_48 = arith.constant 8 : i32
    %123 = arith.muli %c1_i32, %c8_i32_48 : i32
    %124 = tpu.assume_multiple %123, 8 : i32
    %125 = arith.index_cast %124 : i32 to index
    %c0_49 = arith.constant 0 : index
    %126 = vector.load %arg9[%125, %c0_49] : memref<64x32xf32, #tpu.memory_space<vmem>>, vector<8x32xf32>
    tpu.vector_store %arg9[%125, %c0_49], %117 {strides = array<i32>} : memref<64x32xf32, #tpu.memory_space<vmem>>, vector<8x32xf32>,
    %127 = arith.addf %86, %110 : vector<8x32xf32>
    %c2_i32 = arith.constant 2 : i32
    %128 = arith.index_cast %c2_i32 : i32 to index
    %c0_50 = arith.constant 0 : index
    %c0_51 = arith.constant 0 : index
    %129 = vector.load %arg0[%128, %c0_50, %c0_51] : memref<8x8x32xf32, #tpu.memory_space<vmem>>, vector<1x8x32xf32>
    %130 = vector.shape_cast %129 : vector<1x8x32xf32> to vector<8x32xf32>
    %131 = arith.mulf %20, %93 : vector<8x32xf32>
    %132 = arith.addf %131, %130 : vector<8x32xf32>
    %133 = arith.mulf %98, %35 : vector<8x32xf32>
    %134 = arith.subf %132, %133 : vector<8x32xf32>
    %135 = arith.subf %134, %35 : vector<8x32xf32>
    %cst_52 = arith.constant 0.000000e+00 : f32
    %136 = vector.broadcast %cst_52 : f32 to vector<8x32xf32>
    %137 = arith.cmpf ogt, %135, %136 : vector<8x32xf32>
    %138 = arith.extui %137 : vector<8x32xi1> to vector<8x32xi32>
    %139 = arith.sitofp %138 : vector<8x32xi32> to vector<8x32xf32>
    %140 = arith.truncf %139 : vector<8x32xf32> to vector<8x32xbf16>
    %cst_53 = arith.constant dense<0.000000e+00> : vector<8x32xf32>
    %141 = tpu.matmul %140, %2, %cst_53 {dimension_numbers = #tpu.dot_dimension_numbers<[1], [0], [0], [1], [0, 0, 1, 1], [], []>} : vector<8x32xbf16>, vector<32x32xbf16>, vector<8x32xf32> -> vector<8x32xf32>
    %142 = arith.addf %141, %12 : vector<8x32xf32>
    %143 = arith.mulf %23, %105 : vector<8x32xf32>
    %144 = arith.addf %143, %142 : vector<8x32xf32>
    %145 = arith.mulf %110, %38 : vector<8x32xf32>
    %146 = arith.subf %144, %145 : vector<8x32xf32>
    %147 = arith.subf %146, %38 : vector<8x32xf32>
    %cst_54 = arith.constant 0.000000e+00 : f32
    %148 = vector.broadcast %cst_54 : f32 to vector<8x32xf32>
    %149 = arith.cmpf ogt, %147, %148 : vector<8x32xf32>
    %150 = arith.extui %149 : vector<8x32xi1> to vector<8x32xi32>
    %151 = arith.sitofp %150 : vector<8x32xi32> to vector<8x32xf32>
    %152 = arith.truncf %151 : vector<8x32xf32> to vector<8x32xbf16>
    %cst_55 = arith.constant dense<0.000000e+00> : vector<8x32xf32>
    %153 = tpu.matmul %152, %5, %cst_55 {dimension_numbers = #tpu.dot_dimension_numbers<[1], [0], [0], [1], [0, 0, 1, 1], [], []>} : vector<8x32xbf16>, vector<32x32xbf16>, vector<8x32xf32> -> vector<8x32xf32>
    %154 = arith.addf %153, %15 : vector<8x32xf32>
    %155 = arith.mulf %26, %117 : vector<8x32xf32>
    %156 = arith.addf %155, %154 : vector<8x32xf32>
    %157 = arith.mulf %122, %41 : vector<8x32xf32>
    %158 = arith.subf %156, %157 : vector<8x32xf32>
    %159 = arith.subf %158, %41 : vector<8x32xf32>
    %cst_56 = arith.constant 0.000000e+00 : f32
    %160 = vector.broadcast %cst_56 : f32 to vector<8x32xf32>
    %161 = arith.cmpf ogt, %159, %160 : vector<8x32xf32>
    %162 = arith.extui %161 : vector<8x32xi1> to vector<8x32xi32>
    %163 = arith.sitofp %162 : vector<8x32xi32> to vector<8x32xf32>
    %c8_i32_57 = arith.constant 8 : i32
    %164 = arith.muli %c2_i32, %c8_i32_57 : i32
    %165 = tpu.assume_multiple %164, 8 : i32
    %166 = arith.index_cast %165 : i32 to index
    %c0_58 = arith.constant 0 : index
    %167 = vector.load %arg9[%166, %c0_58] : memref<64x32xf32, #tpu.memory_space<vmem>>, vector<8x32xf32>
    tpu.vector_store %arg9[%166, %c0_58], %158 {strides = array<i32>} : memref<64x32xf32, #tpu.memory_space<vmem>>, vector<8x32xf32>,
    %168 = arith.addf %127, %151 : vector<8x32xf32>
    %c3_i32 = arith.constant 3 : i32
    %169 = arith.index_cast %c3_i32 : i32 to index
    %c0_59 = arith.constant 0 : index
    %c0_60 = arith.constant 0 : index
    %170 = vector.load %arg0[%169, %c0_59, %c0_60] : memref<8x8x32xf32, #tpu.memory_space<vmem>>, vector<1x8x32xf32>
    %171 = vector.shape_cast %170 : vector<1x8x32xf32> to vector<8x32xf32>
    %172 = arith.mulf %20, %134 : vector<8x32xf32>
    %173 = arith.addf %172, %171 : vector<8x32xf32>
    %174 = arith.mulf %139, %35 : vector<8x32xf32>
    %175 = arith.subf %173, %174 : vector<8x32xf32>
    %176 = arith.subf %175, %35 : vector<8x32xf32>
    %cst_61 = arith.constant 0.000000e+00 : f32
    %177 = vector.broadcast %cst_61 : f32 to vector<8x32xf32>
    %178 = arith.cmpf ogt, %176, %177 : vector<8x32xf32>
    %179 = arith.extui %178 : vector<8x32xi1> to vector<8x32xi32>
    %180 = arith.sitofp %179 : vector<8x32xi32> to vector<8x32xf32>
    %181 = arith.truncf %180 : vector<8x32xf32> to vector<8x32xbf16>
    %cst_62 = arith.constant dense<0.000000e+00> : vector<8x32xf32>
    %182 = tpu.matmul %181, %2, %cst_62 {dimension_numbers = #tpu.dot_dimension_numbers<[1], [0], [0], [1], [0, 0, 1, 1], [], []>} : vector<8x32xbf16>, vector<32x32xbf16>, vector<8x32xf32> -> vector<8x32xf32>
    %183 = arith.addf %182, %12 : vector<8x32xf32>
    %184 = arith.mulf %23, %146 : vector<8x32xf32>
    %185 = arith.addf %184, %183 : vector<8x32xf32>
    %186 = arith.mulf %151, %38 : vector<8x32xf32>
    %187 = arith.subf %185, %186 : vector<8x32xf32>
    %188 = arith.subf %187, %38 : vector<8x32xf32>
    %cst_63 = arith.constant 0.000000e+00 : f32
    %189 = vector.broadcast %cst_63 : f32 to vector<8x32xf32>
    %190 = arith.cmpf ogt, %188, %189 : vector<8x32xf32>
    %191 = arith.extui %190 : vector<8x32xi1> to vector<8x32xi32>
    %192 = arith.sitofp %191 : vector<8x32xi32> to vector<8x32xf32>
    %193 = arith.truncf %192 : vector<8x32xf32> to vector<8x32xbf16>
    %cst_64 = arith.constant dense<0.000000e+00> : vector<8x32xf32>
    %194 = tpu.matmul %193, %5, %cst_64 {dimension_numbers = #tpu.dot_dimension_numbers<[1], [0], [0], [1], [0, 0, 1, 1], [], []>} : vector<8x32xbf16>, vector<32x32xbf16>, vector<8x32xf32> -> vector<8x32xf32>
    %195 = arith.addf %194, %15 : vector<8x32xf32>
    %196 = arith.mulf %26, %158 : vector<8x32xf32>
    %197 = arith.addf %196, %195 : vector<8x32xf32>
    %198 = arith.mulf %163, %41 : vector<8x32xf32>
    %199 = arith.subf %197, %198 : vector<8x32xf32>
    %200 = arith.subf %199, %41 : vector<8x32xf32>
    %cst_65 = arith.constant 0.000000e+00 : f32
    %201 = vector.broadcast %cst_65 : f32 to vector<8x32xf32>
    %202 = arith.cmpf ogt, %200, %201 : vector<8x32xf32>
    %203 = arith.extui %202 : vector<8x32xi1> to vector<8x32xi32>
    %204 = arith.sitofp %203 : vector<8x32xi32> to vector<8x32xf32>
    %c8_i32_66 = arith.constant 8 : i32
    %205 = arith.muli %c3_i32, %c8_i32_66 : i32
    %206 = tpu.assume_multiple %205, 8 : i32
    %207 = arith.index_cast %206 : i32 to index
    %c0_67 = arith.constant 0 : index
    %208 = vector.load %arg9[%207, %c0_67] : memref<64x32xf32, #tpu.memory_space<vmem>>, vector<8x32xf32>
    tpu.vector_store %arg9[%207, %c0_67], %199 {strides = array<i32>} : memref<64x32xf32, #tpu.memory_space<vmem>>, vector<8x32xf32>,
    %209 = arith.addf %168, %192 : vector<8x32xf32>
    %c4_i32 = arith.constant 4 : i32
    %210 = arith.index_cast %c4_i32 : i32 to index
    %c0_68 = arith.constant 0 : index
    %c0_69 = arith.constant 0 : index
    %211 = vector.load %arg0[%210, %c0_68, %c0_69] : memref<8x8x32xf32, #tpu.memory_space<vmem>>, vector<1x8x32xf32>
    %212 = vector.shape_cast %211 : vector<1x8x32xf32> to vector<8x32xf32>
    %213 = arith.mulf %20, %175 : vector<8x32xf32>
    %214 = arith.addf %213, %212 : vector<8x32xf32>
    %215 = arith.mulf %180, %35 : vector<8x32xf32>
    %216 = arith.subf %214, %215 : vector<8x32xf32>
    %217 = arith.subf %216, %35 : vector<8x32xf32>
    %cst_70 = arith.constant 0.000000e+00 : f32
    %218 = vector.broadcast %cst_70 : f32 to vector<8x32xf32>
    %219 = arith.cmpf ogt, %217, %218 : vector<8x32xf32>
    %220 = arith.extui %219 : vector<8x32xi1> to vector<8x32xi32>
    %221 = arith.sitofp %220 : vector<8x32xi32> to vector<8x32xf32>
    %222 = arith.truncf %221 : vector<8x32xf32> to vector<8x32xbf16>
    %cst_71 = arith.constant dense<0.000000e+00> : vector<8x32xf32>
    %223 = tpu.matmul %222, %2, %cst_71 {dimension_numbers = #tpu.dot_dimension_numbers<[1], [0], [0], [1], [0, 0, 1, 1], [], []>} : vector<8x32xbf16>, vector<32x32xbf16>, vector<8x32xf32> -> vector<8x32xf32>
    %224 = arith.addf %223, %12 : vector<8x32xf32>
    %225 = arith.mulf %23, %187 : vector<8x32xf32>
    %226 = arith.addf %225, %224 : vector<8x32xf32>
    %227 = arith.mulf %192, %38 : vector<8x32xf32>
    %228 = arith.subf %226, %227 : vector<8x32xf32>
    %229 = arith.subf %228, %38 : vector<8x32xf32>
    %cst_72 = arith.constant 0.000000e+00 : f32
    %230 = vector.broadcast %cst_72 : f32 to vector<8x32xf32>
    %231 = arith.cmpf ogt, %229, %230 : vector<8x32xf32>
    %232 = arith.extui %231 : vector<8x32xi1> to vector<8x32xi32>
    %233 = arith.sitofp %232 : vector<8x32xi32> to vector<8x32xf32>
    %234 = arith.truncf %233 : vector<8x32xf32> to vector<8x32xbf16>
    %cst_73 = arith.constant dense<0.000000e+00> : vector<8x32xf32>
    %235 = tpu.matmul %234, %5, %cst_73 {dimension_numbers = #tpu.dot_dimension_numbers<[1], [0], [0], [1], [0, 0, 1, 1], [], []>} : vector<8x32xbf16>, vector<32x32xbf16>, vector<8x32xf32> -> vector<8x32xf32>
    %236 = arith.addf %235, %15 : vector<8x32xf32>
    %237 = arith.mulf %26, %199 : vector<8x32xf32>
    %238 = arith.addf %237, %236 : vector<8x32xf32>
    %239 = arith.mulf %204, %41 : vector<8x32xf32>
    %240 = arith.subf %238, %239 : vector<8x32xf32>
    %241 = arith.subf %240, %41 : vector<8x32xf32>
    %cst_74 = arith.constant 0.000000e+00 : f32
    %242 = vector.broadcast %cst_74 : f32 to vector<8x32xf32>
    %243 = arith.cmpf ogt, %241, %242 : vector<8x32xf32>
    %244 = arith.extui %243 : vector<8x32xi1> to vector<8x32xi32>
    %245 = arith.sitofp %244 : vector<8x32xi32> to vector<8x32xf32>
    %c8_i32_75 = arith.constant 8 : i32
    %246 = arith.muli %c4_i32, %c8_i32_75 : i32
    %247 = tpu.assume_multiple %246, 8 : i32
    %248 = arith.index_cast %247 : i32 to index
    %c0_76 = arith.constant 0 : index
    %249 = vector.load %arg9[%248, %c0_76] : memref<64x32xf32, #tpu.memory_space<vmem>>, vector<8x32xf32>
    tpu.vector_store %arg9[%248, %c0_76], %240 {strides = array<i32>} : memref<64x32xf32, #tpu.memory_space<vmem>>, vector<8x32xf32>,
    %250 = arith.addf %209, %233 : vector<8x32xf32>
    %c5_i32 = arith.constant 5 : i32
    %251 = arith.index_cast %c5_i32 : i32 to index
    %c0_77 = arith.constant 0 : index
    %c0_78 = arith.constant 0 : index
    %252 = vector.load %arg0[%251, %c0_77, %c0_78] : memref<8x8x32xf32, #tpu.memory_space<vmem>>, vector<1x8x32xf32>
    %253 = vector.shape_cast %252 : vector<1x8x32xf32> to vector<8x32xf32>
    %254 = arith.mulf %20, %216 : vector<8x32xf32>
    %255 = arith.addf %254, %253 : vector<8x32xf32>
    %256 = arith.mulf %221, %35 : vector<8x32xf32>
    %257 = arith.subf %255, %256 : vector<8x32xf32>
    %258 = arith.subf %257, %35 : vector<8x32xf32>
    %cst_79 = arith.constant 0.000000e+00 : f32
    %259 = vector.broadcast %cst_79 : f32 to vector<8x32xf32>
    %260 = arith.cmpf ogt, %258, %259 : vector<8x32xf32>
    %261 = arith.extui %260 : vector<8x32xi1> to vector<8x32xi32>
    %262 = arith.sitofp %261 : vector<8x32xi32> to vector<8x32xf32>
    %263 = arith.truncf %262 : vector<8x32xf32> to vector<8x32xbf16>
    %cst_80 = arith.constant dense<0.000000e+00> : vector<8x32xf32>
    %264 = tpu.matmul %263, %2, %cst_80 {dimension_numbers = #tpu.dot_dimension_numbers<[1], [0], [0], [1], [0, 0, 1, 1], [], []>} : vector<8x32xbf16>, vector<32x32xbf16>, vector<8x32xf32> -> vector<8x32xf32>
    %265 = arith.addf %264, %12 : vector<8x32xf32>
    %266 = arith.mulf %23, %228 : vector<8x32xf32>
    %267 = arith.addf %266, %265 : vector<8x32xf32>
    %268 = arith.mulf %233, %38 : vector<8x32xf32>
    %269 = arith.subf %267, %268 : vector<8x32xf32>
    %270 = arith.subf %269, %38 : vector<8x32xf32>
    %cst_81 = arith.constant 0.000000e+00 : f32
    %271 = vector.broadcast %cst_81 : f32 to vector<8x32xf32>
    %272 = arith.cmpf ogt, %270, %271 : vector<8x32xf32>
    %273 = arith.extui %272 : vector<8x32xi1> to vector<8x32xi32>
    %274 = arith.sitofp %273 : vector<8x32xi32> to vector<8x32xf32>
    %275 = arith.truncf %274 : vector<8x32xf32> to vector<8x32xbf16>
    %cst_82 = arith.constant dense<0.000000e+00> : vector<8x32xf32>
    %276 = tpu.matmul %275, %5, %cst_82 {dimension_numbers = #tpu.dot_dimension_numbers<[1], [0], [0], [1], [0, 0, 1, 1], [], []>} : vector<8x32xbf16>, vector<32x32xbf16>, vector<8x32xf32> -> vector<8x32xf32>
    %277 = arith.addf %276, %15 : vector<8x32xf32>
    %278 = arith.mulf %26, %240 : vector<8x32xf32>
    %279 = arith.addf %278, %277 : vector<8x32xf32>
    %280 = arith.mulf %245, %41 : vector<8x32xf32>
    %281 = arith.subf %279, %280 : vector<8x32xf32>
    %282 = arith.subf %281, %41 : vector<8x32xf32>
    %cst_83 = arith.constant 0.000000e+00 : f32
    %283 = vector.broadcast %cst_83 : f32 to vector<8x32xf32>
    %284 = arith.cmpf ogt, %282, %283 : vector<8x32xf32>
    %285 = arith.extui %284 : vector<8x32xi1> to vector<8x32xi32>
    %286 = arith.sitofp %285 : vector<8x32xi32> to vector<8x32xf32>
    %c8_i32_84 = arith.constant 8 : i32
    %287 = arith.muli %c5_i32, %c8_i32_84 : i32
    %288 = tpu.assume_multiple %287, 8 : i32
    %289 = arith.index_cast %288 : i32 to index
    %c0_85 = arith.constant 0 : index
    %290 = vector.load %arg9[%289, %c0_85] : memref<64x32xf32, #tpu.memory_space<vmem>>, vector<8x32xf32>
    tpu.vector_store %arg9[%289, %c0_85], %281 {strides = array<i32>} : memref<64x32xf32, #tpu.memory_space<vmem>>, vector<8x32xf32>,
    %291 = arith.addf %250, %274 : vector<8x32xf32>
    %c6_i32 = arith.constant 6 : i32
    %292 = arith.index_cast %c6_i32 : i32 to index
    %c0_86 = arith.constant 0 : index
    %c0_87 = arith.constant 0 : index
    %293 = vector.load %arg0[%292, %c0_86, %c0_87] : memref<8x8x32xf32, #tpu.memory_space<vmem>>, vector<1x8x32xf32>
    %294 = vector.shape_cast %293 : vector<1x8x32xf32> to vector<8x32xf32>
    %295 = arith.mulf %20, %257 : vector<8x32xf32>
    %296 = arith.addf %295, %294 : vector<8x32xf32>
    %297 = arith.mulf %262, %35 : vector<8x32xf32>
    %298 = arith.subf %296, %297 : vector<8x32xf32>
    %299 = arith.subf %298, %35 : vector<8x32xf32>
    %cst_88 = arith.constant 0.000000e+00 : f32
    %300 = vector.broadcast %cst_88 : f32 to vector<8x32xf32>
    %301 = arith.cmpf ogt, %299, %300 : vector<8x32xf32>
    %302 = arith.extui %301 : vector<8x32xi1> to vector<8x32xi32>
    %303 = arith.sitofp %302 : vector<8x32xi32> to vector<8x32xf32>
    %304 = arith.truncf %303 : vector<8x32xf32> to vector<8x32xbf16>
    %cst_89 = arith.constant dense<0.000000e+00> : vector<8x32xf32>
    %305 = tpu.matmul %304, %2, %cst_89 {dimension_numbers = #tpu.dot_dimension_numbers<[1], [0], [0], [1], [0, 0, 1, 1], [], []>} : vector<8x32xbf16>, vector<32x32xbf16>, vector<8x32xf32> -> vector<8x32xf32>
    %306 = arith.addf %305, %12 : vector<8x32xf32>
    %307 = arith.mulf %23, %269 : vector<8x32xf32>
    %308 = arith.addf %307, %306 : vector<8x32xf32>
    %309 = arith.mulf %274, %38 : vector<8x32xf32>
    %310 = arith.subf %308, %309 : vector<8x32xf32>
    %311 = arith.subf %310, %38 : vector<8x32xf32>
    %cst_90 = arith.constant 0.000000e+00 : f32
    %312 = vector.broadcast %cst_90 : f32 to vector<8x32xf32>
    %313 = arith.cmpf ogt, %311, %312 : vector<8x32xf32>
    %314 = arith.extui %313 : vector<8x32xi1> to vector<8x32xi32>
    %315 = arith.sitofp %314 : vector<8x32xi32> to vector<8x32xf32>
    %316 = arith.truncf %315 : vector<8x32xf32> to vector<8x32xbf16>
    %cst_91 = arith.constant dense<0.000000e+00> : vector<8x32xf32>
    %317 = tpu.matmul %316, %5, %cst_91 {dimension_numbers = #tpu.dot_dimension_numbers<[1], [0], [0], [1], [0, 0, 1, 1], [], []>} : vector<8x32xbf16>, vector<32x32xbf16>, vector<8x32xf32> -> vector<8x32xf32>
    %318 = arith.addf %317, %15 : vector<8x32xf32>
    %319 = arith.mulf %26, %281 : vector<8x32xf32>
    %320 = arith.addf %319, %318 : vector<8x32xf32>
    %321 = arith.mulf %286, %41 : vector<8x32xf32>
    %322 = arith.subf %320, %321 : vector<8x32xf32>
    %323 = arith.subf %322, %41 : vector<8x32xf32>
    %cst_92 = arith.constant 0.000000e+00 : f32
    %324 = vector.broadcast %cst_92 : f32 to vector<8x32xf32>
    %325 = arith.cmpf ogt, %323, %324 : vector<8x32xf32>
    %326 = arith.extui %325 : vector<8x32xi1> to vector<8x32xi32>
    %327 = arith.sitofp %326 : vector<8x32xi32> to vector<8x32xf32>
    %c8_i32_93 = arith.constant 8 : i32
    %328 = arith.muli %c6_i32, %c8_i32_93 : i32
    %329 = tpu.assume_multiple %328, 8 : i32
    %330 = arith.index_cast %329 : i32 to index
    %c0_94 = arith.constant 0 : index
    %331 = vector.load %arg9[%330, %c0_94] : memref<64x32xf32, #tpu.memory_space<vmem>>, vector<8x32xf32>
    tpu.vector_store %arg9[%330, %c0_94], %322 {strides = array<i32>} : memref<64x32xf32, #tpu.memory_space<vmem>>, vector<8x32xf32>,
    %332 = arith.addf %291, %315 : vector<8x32xf32>
    %c7_i32 = arith.constant 7 : i32
    %333 = arith.index_cast %c7_i32 : i32 to index
    %c0_95 = arith.constant 0 : index
    %c0_96 = arith.constant 0 : index
    %334 = vector.load %arg0[%333, %c0_95, %c0_96] : memref<8x8x32xf32, #tpu.memory_space<vmem>>, vector<1x8x32xf32>
    %335 = vector.shape_cast %334 : vector<1x8x32xf32> to vector<8x32xf32>
    %336 = arith.mulf %20, %298 : vector<8x32xf32>
    %337 = arith.addf %336, %335 : vector<8x32xf32>
    %338 = arith.mulf %303, %35 : vector<8x32xf32>
    %339 = arith.subf %337, %338 : vector<8x32xf32>
    %340 = arith.subf %339, %35 : vector<8x32xf32>
    %cst_97 = arith.constant 0.000000e+00 : f32
    %341 = vector.broadcast %cst_97 : f32 to vector<8x32xf32>
    %342 = arith.cmpf ogt, %340, %341 : vector<8x32xf32>
    %343 = arith.extui %342 : vector<8x32xi1> to vector<8x32xi32>
    %344 = arith.sitofp %343 : vector<8x32xi32> to vector<8x32xf32>
    %345 = arith.truncf %344 : vector<8x32xf32> to vector<8x32xbf16>
    %cst_98 = arith.constant dense<0.000000e+00> : vector<8x32xf32>
    %346 = tpu.matmul %345, %2, %cst_98 {dimension_numbers = #tpu.dot_dimension_numbers<[1], [0], [0], [1], [0, 0, 1, 1], [], []>} : vector<8x32xbf16>, vector<32x32xbf16>, vector<8x32xf32> -> vector<8x32xf32>
    %347 = arith.addf %346, %12 : vector<8x32xf32>
    %348 = arith.mulf %23, %310 : vector<8x32xf32>
    %349 = arith.addf %348, %347 : vector<8x32xf32>
    %350 = arith.mulf %315, %38 : vector<8x32xf32>
    %351 = arith.subf %349, %350 : vector<8x32xf32>
    %352 = arith.subf %351, %38 : vector<8x32xf32>
    %cst_99 = arith.constant 0.000000e+00 : f32
    %353 = vector.broadcast %cst_99 : f32 to vector<8x32xf32>
    %354 = arith.cmpf ogt, %352, %353 : vector<8x32xf32>
    %355 = arith.extui %354 : vector<8x32xi1> to vector<8x32xi32>
    %356 = arith.sitofp %355 : vector<8x32xi32> to vector<8x32xf32>
    %357 = arith.truncf %356 : vector<8x32xf32> to vector<8x32xbf16>
    %cst_100 = arith.constant dense<0.000000e+00> : vector<8x32xf32>
    %358 = tpu.matmul %357, %5, %cst_100 {dimension_numbers = #tpu.dot_dimension_numbers<[1], [0], [0], [1], [0, 0, 1, 1], [], []>} : vector<8x32xbf16>, vector<32x32xbf16>, vector<8x32xf32> -> vector<8x32xf32>
    %359 = arith.addf %358, %15 : vector<8x32xf32>
    %360 = arith.mulf %26, %322 : vector<8x32xf32>
    %361 = arith.addf %360, %359 : vector<8x32xf32>
    %362 = arith.mulf %327, %41 : vector<8x32xf32>
    %363 = arith.subf %361, %362 : vector<8x32xf32>
    %364 = arith.subf %363, %41 : vector<8x32xf32>
    %cst_101 = arith.constant 0.000000e+00 : f32
    %365 = vector.broadcast %cst_101 : f32 to vector<8x32xf32>
    %366 = arith.cmpf ogt, %364, %365 : vector<8x32xf32>
    %367 = arith.extui %366 : vector<8x32xi1> to vector<8x32xi32>
    %368 = arith.sitofp %367 : vector<8x32xi32> to vector<8x32xf32>
    %c8_i32_102 = arith.constant 8 : i32
    %369 = arith.muli %c7_i32, %c8_i32_102 : i32
    %370 = tpu.assume_multiple %369, 8 : i32
    %371 = arith.index_cast %370 : i32 to index
    %c0_103 = arith.constant 0 : index
    %372 = vector.load %arg9[%371, %c0_103] : memref<64x32xf32, #tpu.memory_space<vmem>>, vector<8x32xf32>
    tpu.vector_store %arg9[%371, %c0_103], %363 {strides = array<i32>} : memref<64x32xf32, #tpu.memory_space<vmem>>, vector<8x32xf32>,
    %373 = arith.addf %332, %356 : vector<8x32xf32>
    %c8_i32_104 = arith.constant 8 : i32
    %c0_105 = arith.constant 0 : index
    %c0_106 = arith.constant 0 : index
    %374 = vector.load %arg8[%c0_105, %c0_106] : memref<8x32xf32, #tpu.memory_space<vmem>>, vector<8x32xf32>
    tpu.vector_store %arg8[%c0_105, %c0_106], %373 {strides = array<i32>} : memref<8x32xf32, #tpu.memory_space<vmem>>, vector<8x32xf32>,
    %c0_107 = arith.constant 0 : index
    %c0_108 = arith.constant 0 : index
    %375 = vector.load %arg9[%c0_107, %c0_108] : memref<64x32xf32, #tpu.memory_space<vmem>>, vector<64x32xf32>
    %cst_109 = arith.constant dense<0.000000e+00> : vector<64x32xf32>
    %376 = tpu.matmul %375, %7, %cst_109 {dimension_numbers = #tpu.dot_dimension_numbers<[1], [0], [0], [1], [0, 0, 1, 1], [], []>} : vector<64x32xf32>, vector<32x32xf32>, vector<64x32xf32> -> vector<64x32xf32>
    %377 = vector.broadcast %16 : vector<1x32xf32> to vector<64x32xf32>
    %378 = arith.addf %376, %377 : vector<64x32xf32>
    %379 = arith.mulf %29, %45 : vector<8x32xf32>
    %380 = vector.extract_strided_slice %378 {offsets = [0, 0], sizes = [8, 32], strides = [1, 1]} : vector<64x32xf32> to vector<8x32xf32>
    %381 = arith.addf %379, %380 : vector<8x32xf32>
    %382 = arith.mulf %29, %381 : vector<8x32xf32>
    %383 = vector.extract_strided_slice %378 {offsets = [8, 0], sizes = [8, 32], strides = [1, 1]} : vector<64x32xf32> to vector<8x32xf32>
    %384 = arith.addf %382, %383 : vector<8x32xf32>
    %385 = arith.mulf %29, %384 : vector<8x32xf32>
    %386 = vector.extract_strided_slice %378 {offsets = [16, 0], sizes = [8, 32], strides = [1, 1]} : vector<64x32xf32> to vector<8x32xf32>
    %387 = arith.addf %385, %386 : vector<8x32xf32>
    %388 = arith.mulf %29, %387 : vector<8x32xf32>
    %389 = vector.extract_strided_slice %378 {offsets = [24, 0], sizes = [8, 32], strides = [1, 1]} : vector<64x32xf32> to vector<8x32xf32>
    %390 = arith.addf %388, %389 : vector<8x32xf32>
    %391 = arith.mulf %29, %390 : vector<8x32xf32>
    %392 = vector.extract_strided_slice %378 {offsets = [32, 0], sizes = [8, 32], strides = [1, 1]} : vector<64x32xf32> to vector<8x32xf32>
    %393 = arith.addf %391, %392 : vector<8x32xf32>
    %394 = arith.mulf %29, %393 : vector<8x32xf32>
    %395 = vector.extract_strided_slice %378 {offsets = [40, 0], sizes = [8, 32], strides = [1, 1]} : vector<64x32xf32> to vector<8x32xf32>
    %396 = arith.addf %394, %395 : vector<8x32xf32>
    %397 = arith.mulf %29, %396 : vector<8x32xf32>
    %398 = vector.extract_strided_slice %378 {offsets = [48, 0], sizes = [8, 32], strides = [1, 1]} : vector<64x32xf32> to vector<8x32xf32>
    %399 = arith.addf %397, %398 : vector<8x32xf32>
    %400 = arith.mulf %29, %399 : vector<8x32xf32>
    %401 = vector.extract_strided_slice %378 {offsets = [56, 0], sizes = [8, 32], strides = [1, 1]} : vector<64x32xf32> to vector<8x32xf32>
    %402 = arith.addf %400, %401 : vector<8x32xf32>
    %403 = tpu.concatenate %381, %384, %387, %390, %393, %396, %399, %402 in 0 : vector<8x32xf32>, vector<8x32xf32>, vector<8x32xf32>, vector<8x32xf32>, vector<8x32xf32>, vector<8x32xf32>, vector<8x32xf32>, vector<8x32xf32> -> vector<64x32xf32>
    %cst_110 = arith.constant dense<0.000000e+00> : vector<64x32xf32>
    %404 = tpu.matmul %403, %9, %cst_110 {dimension_numbers = #tpu.dot_dimension_numbers<[1], [0], [0], [1], [0, 0, 1, 1], [], []>} : vector<64x32xf32>, vector<32x32xf32>, vector<64x32xf32> -> vector<64x32xf32>
    %405 = vector.broadcast %17 : vector<1x32xf32> to vector<64x32xf32>
    %406 = arith.addf %404, %405 : vector<64x32xf32>
    %c0_111 = arith.constant 0 : index
    %c0_112 = arith.constant 0 : index
    %407 = vector.load %arg5[%c0_111, %c0_112] : memref<64x32xf32, #tpu.memory_space<vmem>>, vector<64x32xf32>
    tpu.vector_store %arg5[%c0_111, %c0_112], %406 {strides = array<i32>} : memref<64x32xf32, #tpu.memory_space<vmem>>, vector<64x32xf32>,
    %cst_113 = arith.constant 0.000000e+00 : f32
    %408 = vector.broadcast %cst_113 : f32 to vector<8x32xf32>
    %409 = arith.mulf %32, %408 : vector<8x32xf32>
    %410 = vector.extract_strided_slice %406 {offsets = [0, 0], sizes = [8, 32], strides = [1, 1]} : vector<64x32xf32> to vector<8x32xf32>
    %411 = arith.addf %409, %410 : vector<8x32xf32>
    %412 = arith.subf %411, %44 : vector<8x32xf32>
    %cst_114 = arith.constant 0.000000e+00 : f32
    %413 = vector.broadcast %cst_114 : f32 to vector<8x32xf32>
    %414 = arith.cmpf ogt, %412, %413 : vector<8x32xf32>
    %415 = arith.extui %414 : vector<8x32xi1> to vector<8x32xi32>
    %416 = arith.sitofp %415 : vector<8x32xi32> to vector<8x32xf32>
    %417 = arith.mulf %32, %411 : vector<8x32xf32>
    %418 = vector.extract_strided_slice %406 {offsets = [8, 0], sizes = [8, 32], strides = [1, 1]} : vector<64x32xf32> to vector<8x32xf32>
    %419 = arith.addf %417, %418 : vector<8x32xf32>
    %420 = arith.subf %419, %44 : vector<8x32xf32>
    %cst_115 = arith.constant 0.000000e+00 : f32
    %421 = vector.broadcast %cst_115 : f32 to vector<8x32xf32>
    %422 = arith.cmpf ogt, %420, %421 : vector<8x32xf32>
    %423 = arith.extui %422 : vector<8x32xi1> to vector<8x32xi32>
    %424 = arith.sitofp %423 : vector<8x32xi32> to vector<8x32xf32>
    %425 = arith.mulf %32, %419 : vector<8x32xf32>
    %426 = vector.extract_strided_slice %406 {offsets = [16, 0], sizes = [8, 32], strides = [1, 1]} : vector<64x32xf32> to vector<8x32xf32>
    %427 = arith.addf %425, %426 : vector<8x32xf32>
    %428 = arith.subf %427, %44 : vector<8x32xf32>
    %cst_116 = arith.constant 0.000000e+00 : f32
    %429 = vector.broadcast %cst_116 : f32 to vector<8x32xf32>
    %430 = arith.cmpf ogt, %428, %429 : vector<8x32xf32>
    %431 = arith.extui %430 : vector<8x32xi1> to vector<8x32xi32>
    %432 = arith.sitofp %431 : vector<8x32xi32> to vector<8x32xf32>
    %433 = arith.mulf %32, %427 : vector<8x32xf32>
    %434 = vector.extract_strided_slice %406 {offsets = [24, 0], sizes = [8, 32], strides = [1, 1]} : vector<64x32xf32> to vector<8x32xf32>
    %435 = arith.addf %433, %434 : vector<8x32xf32>
    %436 = arith.subf %435, %44 : vector<8x32xf32>
    %cst_117 = arith.constant 0.000000e+00 : f32
    %437 = vector.broadcast %cst_117 : f32 to vector<8x32xf32>
    %438 = arith.cmpf ogt, %436, %437 : vector<8x32xf32>
    %439 = arith.extui %438 : vector<8x32xi1> to vector<8x32xi32>
    %440 = arith.sitofp %439 : vector<8x32xi32> to vector<8x32xf32>
    %441 = arith.mulf %32, %435 : vector<8x32xf32>
    %442 = vector.extract_strided_slice %406 {offsets = [32, 0], sizes = [8, 32], strides = [1, 1]} : vector<64x32xf32> to vector<8x32xf32>
    %443 = arith.addf %441, %442 : vector<8x32xf32>
    %444 = arith.subf %443, %44 : vector<8x32xf32>
    %cst_118 = arith.constant 0.000000e+00 : f32
    %445 = vector.broadcast %cst_118 : f32 to vector<8x32xf32>
    %446 = arith.cmpf ogt, %444, %445 : vector<8x32xf32>
    %447 = arith.extui %446 : vector<8x32xi1> to vector<8x32xi32>
    %448 = arith.sitofp %447 : vector<8x32xi32> to vector<8x32xf32>
    %449 = arith.mulf %32, %443 : vector<8x32xf32>
    %450 = vector.extract_strided_slice %406 {offsets = [40, 0], sizes = [8, 32], strides = [1, 1]} : vector<64x32xf32> to vector<8x32xf32>
    %451 = arith.addf %449, %450 : vector<8x32xf32>
    %452 = arith.subf %451, %44 : vector<8x32xf32>
    %cst_119 = arith.constant 0.000000e+00 : f32
    %453 = vector.broadcast %cst_119 : f32 to vector<8x32xf32>
    %454 = arith.cmpf ogt, %452, %453 : vector<8x32xf32>
    %455 = arith.extui %454 : vector<8x32xi1> to vector<8x32xi32>
    %456 = arith.sitofp %455 : vector<8x32xi32> to vector<8x32xf32>
    %457 = arith.mulf %32, %451 : vector<8x32xf32>
    %458 = vector.extract_strided_slice %406 {offsets = [48, 0], sizes = [8, 32], strides = [1, 1]} : vector<64x32xf32> to vector<8x32xf32>
    %459 = arith.addf %457, %458 : vector<8x32xf32>
    %460 = arith.subf %459, %44 : vector<8x32xf32>
    %cst_120 = arith.constant 0.000000e+00 : f32
    %461 = vector.broadcast %cst_120 : f32 to vector<8x32xf32>
    %462 = arith.cmpf ogt, %460, %461 : vector<8x32xf32>
    %463 = arith.extui %462 : vector<8x32xi1> to vector<8x32xi32>
    %464 = arith.sitofp %463 : vector<8x32xi32> to vector<8x32xf32>
    %465 = arith.mulf %32, %459 : vector<8x32xf32>
    %466 = vector.extract_strided_slice %406 {offsets = [56, 0], sizes = [8, 32], strides = [1, 1]} : vector<64x32xf32> to vector<8x32xf32>
    %467 = arith.addf %465, %466 : vector<8x32xf32>
    %468 = arith.subf %467, %44 : vector<8x32xf32>
    %cst_121 = arith.constant 0.000000e+00 : f32
    %469 = vector.broadcast %cst_121 : f32 to vector<8x32xf32>
    %470 = arith.cmpf ogt, %468, %469 : vector<8x32xf32>
    %471 = arith.extui %470 : vector<8x32xi1> to vector<8x32xi32>
    %472 = arith.sitofp %471 : vector<8x32xi32> to vector<8x32xf32>
    %473 = tpu.concatenate %411, %419, %427, %435, %443, %451, %459, %467 in 0 : vector<8x32xf32>, vector<8x32xf32>, vector<8x32xf32>, vector<8x32xf32>, vector<8x32xf32>, vector<8x32xf32>, vector<8x32xf32>, vector<8x32xf32> -> vector<64x32xf32>
    %c0_122 = arith.constant 0 : index
    %c0_123 = arith.constant 0 : index
    %474 = vector.load %arg7[%c0_122, %c0_123] : memref<64x32xf32, #tpu.memory_space<vmem>>, vector<64x32xf32>
    tpu.vector_store %arg7[%c0_122, %c0_123], %473 {strides = array<i32>} : memref<64x32xf32, #tpu.memory_space<vmem>>, vector<64x32xf32>,
    %475 = tpu.concatenate %416, %424, %432, %440, %448, %456, %464, %472 in 0 : vector<8x32xf32>, vector<8x32xf32>, vector<8x32xf32>, vector<8x32xf32>, vector<8x32xf32>, vector<8x32xf32>, vector<8x32xf32>, vector<8x32xf32> -> vector<64x32xf32>
    %c0_124 = arith.constant 0 : index
    %c0_125 = arith.constant 0 : index
    %476 = vector.load %arg6[%c0_124, %c0_125] : memref<64x32xf32, #tpu.memory_space<vmem>>, vector<64x32xf32>
    tpu.vector_store %arg6[%c0_124, %c0_125], %475 {strides = array<i32>} : memref<64x32xf32, #tpu.memory_space<vmem>>, vector<64x32xf32>,
    return
  }
}

</mosaic_0001>

<llo_original>
// kernel: rlif_forward.1
$region0: #{rlif_forward.1}
  #allocation0 [shape = 'u32[]', space=smem, size = 0x4, offset = 0x4, fixed_abs, tag = 'smem constant byte address 0x4 - core index']
  #allocation1 [shape = 'u32[72,128]{1,0:T(1,128)}', space=vmem, size = 0x9000, scoped, tag = 'internal scratch']
  #allocation2 [shape = 'f32[64,32]{1,0:T(8,128)}', space=vmem, size = 0x8000, scoped, tag = 'scratch operand']
  %s0 = inlined_call_operand.vmem [shape: f32[8,8,32], index: 0, kind: input, shape index: {}]
  %s1 = inlined_call_operand.hbm [shape: f32[4,32,32], index: 1, kind: input, shape index: {}]
  %s2 = inlined_call_operand.vmem [shape: f32[4,32], index: 2, kind: input, shape index: {}]
  %s3 = inlined_call_operand.vmem [shape: f32[5,32], index: 3, kind: input, shape index: {}]
  %s4 = inlined_call_operand.vmem [shape: f32[5,32], index: 4, kind: input, shape index: {}]
  %s5 = inlined_call_operand.hbm [shape: f32[64,32], index: 5, kind: output, shape index: {0}]
  %s6 = inlined_call_operand.hbm [shape: f32[64,32], index: 6, kind: output, shape index: {1}]
  %s7 = inlined_call_operand.vmem [shape: f32[64,32], index: 7, kind: output, shape index: {2}]
  %s8 = inlined_call_operand.vmem [shape: f32[8,32], index: 8, kind: output, shape index: {3}]
  %9 = xla_tuple %s5, %s6, %s7, %s8
  %s10 = sld [smem:[#allocation0]]
  $region58: #{rlif_forward.1} parent=0
    _
  %s12 = ssub.s32 1, %s10
  %s13 = scalar_select 0, %s12, %s10
  $region1: #{rlif_forward.1} parent=0
    #allocation3 [shape = 'u8[65536]{0}', space=vmem, size = 0x10000, scoped, tag = 'input window, operand 1, single buffered']
    #allocation4 [shape = 's32[1]{0}', space=sflag, size = 0x4, scoped, tag = 'scoped memory for rlif_forward.1']
    #allocation5 [shape = 's32[1]{0}', space=sflag, size = 0x4, scoped, tag = 'scoped memory for rlif_forward.1']
    #allocation6 [shape = 'u8[32768]{0}', space=vmem, size = 0x8000, scoped, tag = 'output window, operand 0, single buffered']
    #allocation7 [shape = 'u8[32768]{0}', space=vmem, size = 0x8000, scoped, tag = 'output window, operand 1, single buffered']
    #allocation8 [shape = 's32[1]{0}', space=sflag, size = 0x4, scoped, tag = 'scoped memory for rlif_forward.1']
    %14 = vsyncpa [#allocation4], 0
    %15 = vsyncpa [#allocation5], 0
    %16 = vsyncpa [#allocation8], 0
    // Predicated region
    $region2: #{rlif_forward.1} parent=1 // pred_check
      _
    $region3: #{rlif_forward.1} parent=1 // pred_check_branch
      %18 = sbr.rel (0) target = $region5
    $region4: #{rlif_forward.1} parent=1 // pred_region
      _
    $region5: #{rlif_forward.1} parent=1 // pred_fallthru
      _
    // Predicated region
    $region6: #{rlif_forward.1} parent=1 // pred_check
      _
    $region7: #{rlif_forward.1} parent=1 // pred_check_branch
      %20 = sbr.rel (0) target = $region9
    $region8: #{rlif_forward.1} parent=1 // pred_region
      %22 = vsyncadd [#allocation4], 0
      %s23 = sshll.u32 %s1, 4
      %s24 = int_to_ptr.hbm [resolvable:$true] %s23
      %s25 = sshll.u32 [#allocation3], 4
      %s26 = int_to_ptr.vmem [resolvable:$true] %s25
      %31 = dma.hbm_to_vmem [thread:$0]  %s24, 2048, %s26, [#allocation4], 128, 128, 8
    $region9: #{rlif_forward.1} parent=1 // pred_fallthru
      _
    // Predicated region
    $region10: #{rlif_forward.1} parent=1 // pred_check
      _
    $region11: #{rlif_forward.1} parent=1 // pred_check_branch
      %33 = sbr.rel (0) target = $region13
    $region12: #{rlif_forward.1} parent=1 // pred_region
      _
    $region13: #{rlif_forward.1} parent=1 // pred_fallthru
      _
    // Predicated region
    $region14: #{rlif_forward.1} parent=1 // pred_check
      _
    $region15: #{rlif_forward.1} parent=1 // pred_check_branch
      %35 = sbr.rel (0) target = $region17
    $region16: #{rlif_forward.1} parent=1 // pred_region
      _
    $region17: #{rlif_forward.1} parent=1 // pred_fallthru
      _
    // Predicated region
    $region18: #{rlif_forward.1} parent=1 // pred_check
      _
    $region19: #{rlif_forward.1} parent=1 // pred_check_branch
      %37 = sbr.rel (0) target = $region21
    $region20: #{rlif_forward.1} parent=1 // pred_region
      _
    $region21: #{rlif_forward.1} parent=1 // pred_fallthru
      _
    // Predicated region
    $region22: #{rlif_forward.1} parent=1 // pred_check
      _
    $region23: #{rlif_forward.1} parent=1 // pred_check_branch
      %39 = sbr.rel (0) target = $region25
    $region24: #{rlif_forward.1} parent=1 // pred_region
      %41 = dma.done [#allocation4], 2048
    $region25: #{rlif_forward.1} parent=1 // pred_fallthru
      _
    %v43 = vld [vmem:[#allocation3] sm:$0xff]
    %v44 = vld [vmem:[#allocation3 + $0x8] sm:$0xff]
    %v45 = vld [vmem:[#allocation3 + $0x10] sm:$0xff]
    %v46 = vld [vmem:[#allocation3 + $0x18] sm:$0xff]
    %v47 = vpack.c.bf16 %v44, %v43
    %v48 = vpack.c.bf16 %v46, %v45
    %s49 = scalar_lea.vmem [#allocation3], 32
    %v50 = vld [vmem:[%s49] sm:$0xff]
    %v51 = vld [vmem:[%s49 + $0x8] sm:$0xff]
    %v52 = vld [vmem:[%s49 + $0x10] sm:$0xff]
    %v53 = vld [vmem:[%s49 + $0x18] sm:$0xff]
    %v54 = vpack.c.bf16 %v51, %v50
    %v55 = vpack.c.bf16 %v53, %v52
    %s56 = scalar_lea.vmem [#allocation3], 64
    %v57 = vld [vmem:[%s56] sm:$0xff]
    %v58 = vld [vmem:[%s56 + $0x8] sm:$0xff]
    %v59 = vld [vmem:[%s56 + $0x10] sm:$0xff]
    %v60 = vld [vmem:[%s56 + $0x18] sm:$0xff]
    %s61 = scalar_lea.vmem [#allocation3], 96
    %v62 = vld [vmem:[%s61] sm:$0xff]
    %v63 = vld [vmem:[%s61 + $0x8] sm:$0xff]
    %v64 = vld [vmem:[%s61 + $0x10] sm:$0xff]
    %v65 = vld [vmem:[%s61 + $0x18] sm:$0xff]
    %v66 = vld [vmem:[%s2] sm:$0x1]
    %v67 = vperm.slane %v66, 0
    %v68 = vld [vmem:[%s2 + $0x1] sm:$0x1]
    %v69 = vperm.slane %v68, 0
    %v70 = vld [vmem:[%s2 + $0x2] sm:$0x1]
    %v71 = vld [vmem:[%s2 + $0x3] sm:$0x1]
    %v72 = vld [vmem:[%s3] sm:$0x1]
    %v73 = vperm.slane %v72, 0
    %v74 = vld [vmem:[%s3 + $0x1] sm:$0x1]
    %v75 = vperm.slane %v74, 0
    %v76 = vld [vmem:[%s3 + $0x2] sm:$0x1]
    %v77 = vperm.slane %v76, 0
    %v78 = vld [vmem:[%s3 + $0x3] sm:$0x1]
    %v79 = vperm.slane %v78, 0
    %v80 = vld [vmem:[%s3 + $0x4] sm:$0x1]
    %v81 = vperm.slane %v80, 0
    %v82 = vld [vmem:[%s4] sm:$0x1]
    %v83 = vperm.slane %v82, 0
    %v84 = vld [vmem:[%s4 + $0x1] sm:$0x1]
    %v85 = vperm.slane %v84, 0
    %v86 = vld [vmem:[%s4 + $0x2] sm:$0x1]
    %v87 = vperm.slane %v86, 0
    %v88 = vld [vmem:[%s4 + $0x4] sm:$0x1]
    %v89 = vperm.slane %v88, 0
    %v90 = vld [vmem:[%s0] sm:$0xff]
    %v91 = vmul.f32 %v73, 0.0
    %v92 = vadd.f32 %v91, %v90
    %v93 = vmul.f32 %v83, 0.0
    %v94 = vsub.f32 %v92, %v93
    %v95 = vsub.f32 %v94, %v83
    %vm96 = vcmp.gt.f32.partialorder %v95, 0.0
    %v97 = vsel %vm96, 1, 0
    %v98 = vcvt.s32.f32 %v97
    %v99 = vpack.c.bf16 %v98, %v98
    %vm100 = vcmask 261120
    %v102 = vsel %vm100, %v99, 0
    %104 = vmatpush.bf16.msra.mxu0 0
    %105 = vmatpush.bf16.msra.mxu0 0
    %106 = vmatpush.bf16.msra.mxu0 0
    %107 = vmatpush.bf16.msra.mxu0 0
    %108 = vmatpush.bf16.msra.mxu0 0
    %109 = vmatpush.bf16.msra.mxu0 0
    %110 = vmatpush.bf16.msra.mxu0 %v48
    %111 = vmatpush.bf16.msra.mxu0 %v47
    %112 = vmatmul.bf16.gmra.mxu0 %v102
    %v113 = vpop.f32.mrf.mxu0
    %v114 = vadd.f32 %v67, %v113
    %v115 = vpop.f32.mrf.mxu0
    %116 = vdwg.mxu0
    %v117 = vmul.f32 %v75, 0.0
    %v118 = vadd.f32 %v117, %v114
    %v119 = vmul.f32 %v85, 0.0
    %v120 = vsub.f32 %v118, %v119
    %v121 = vsub.f32 %v120, %v85
    %vm122 = vcmp.gt.f32.partialorder %v121, 0.0
    %v123 = vsel %vm122, 1, 0
    %v124 = vcvt.s32.f32 %v123
    %v125 = vpack.c.bf16 %v124, %v124
    %v127 = vsel %vm100, %v125, 0
    %129 = vmatpush.bf16.msra.mxu0 0
    %130 = vmatpush.bf16.msra.mxu0 0
    %131 = vmatpush.bf16.msra.mxu0 0
    %132 = vmatpush.bf16.msra.mxu0 0
    %133 = vmatpush.bf16.msra.mxu0 0
    %134 = vmatpush.bf16.msra.mxu0 0
    %135 = vmatpush.bf16.msra.mxu0 %v55
    %136 = vmatpush.bf16.msra.mxu0 %v54
    %137 = vmatmul.bf16.gmra.mxu0 %v127
    %v138 = vpop.f32.mrf.mxu0
    %v139 = vadd.f32 %v69, %v138
    %v140 = vpop.f32.mrf.mxu0
    %141 = vdwg.mxu0
    %v142 = vmul.f32 %v77, 0.0
    %v143 = vadd.f32 %v142, %v139
    %v144 = vmul.f32 %v87, 0.0
    %v145 = vsub.f32 %v143, %v144
    %v146 = vsub.f32 %v145, %v87
    %vm147 = vcmp.gt.f32.partialorder %v146, 0.0
    %v148 = vsel %vm147, 1, 0
    %v149 = vcvt.s32.f32 %v148
    %150 = vst.msk [vmem:[#allocation2] sm:$0xff] %vm100, %v145
    %v151 = vadd.f32 %v124, 0.0
    %s152 = scalar_lea.vmem %s0, 8
    %v153 = vld [vmem:[%s152] sm:$0xff]
    %v154 = vmul.f32 %v73, %v94
    %v155 = vadd.f32 %v154, %v153
    %v156 = vmul.f32 %v98, %v83
    %v157 = vsub.f32 %v155, %v156
    %v158 = vsub.f32 %v157, %v83
    %vm159 = vcmp.gt.f32.partialorder %v158, 0.0
    %v160 = vsel %vm159, 1, 0
    %v161 = vcvt.s32.f32 %v160
    %v162 = vpack.c.bf16 %v161, %v161
    %v164 = vsel %vm100, %v162, 0
    %166 = vmatpush.bf16.msra.mxu0 0
    %167 = vmatpush.bf16.msra.mxu0 0
    %168 = vmatpush.bf16.msra.mxu0 0
    %169 = vmatpush.bf16.msra.mxu0 0
    %170 = vmatpush.bf16.msra.mxu0 0
    %171 = vmatpush.bf16.msra.mxu0 0
    %172 = vmatpush.bf16.msra.mxu0 %v48
    %173 = vmatpush.bf16.msra.mxu0 %v47
    %174 = vmatmul.bf16.gmra.mxu0 %v164
    %v175 = vpop.f32.mrf.mxu0
    %v176 = vadd.f32 %v67, %v175
    %v177 = vpop.f32.mrf.mxu0
    %178 = vdwg.mxu0
    %v179 = vmul.f32 %v75, %v120
    %v180 = vadd.f32 %v179, %v176
    %v181 = vmul.f32 %v124, %v85
    %v182 = vsub.f32 %v180, %v181
    %v183 = vsub.f32 %v182, %v85
    %vm184 = vcmp.gt.f32.partialorder %v183, 0.0
    %v185 = vsel %vm184, 1, 0
    %v186 = vcvt.s32.f32 %v185
    %v187 = vpack.c.bf16 %v186, %v186
    %v189 = vsel %vm100, %v187, 0
    %191 = vmatpush.bf16.msra.mxu0 0
    %192 = vmatpush.bf16.msra.mxu0 0
    %193 = vmatpush.bf16.msra.mxu0 0
    %194 = vmatpush.bf16.msra.mxu0 0
    %195 = vmatpush.bf16.msra.mxu0 0
    %196 = vmatpush.bf16.msra.mxu0 0
    %197 = vmatpush.bf16.msra.mxu0 %v55
    %198 = vmatpush.bf16.msra.mxu0 %v54
    %199 = vmatmul.bf16.gmra.mxu0 %v189
    %v200 = vpop.f32.mrf.mxu0
    %v201 = vadd.f32 %v69, %v200
    %v202 = vpop.f32.mrf.mxu0
    %203 = vdwg.mxu0
    %v204 = vmul.f32 %v77, %v145
    %v205 = vadd.f32 %v204, %v201
    %v206 = vmul.f32 %v149, %v87
    %v207 = vsub.f32 %v205, %v206
    %v208 = vsub.f32 %v207, %v87
    %vm209 = vcmp.gt.f32.partialorder %v208, 0.0
    %v210 = vsel %vm209, 1, 0
    %v211 = vcvt.s32.f32 %v210
    %s212 = scalar_lea.vmem [#allocation2], 8
    %213 = vst.msk [vmem:[%s212] sm:$0xff] %vm100, %v207
    %v214 = vadd.f32 %v151, %v186
    %s215 = scalar_lea.vmem %s0, 16
    %v216 = vld [vmem:[%s215] sm:$0xff]
    %v217 = vmul.f32 %v73, %v157
    %v218 = vadd.f32 %v217, %v216
    %v219 = vmul.f32 %v161, %v83
    %v220 = vsub.f32 %v218, %v219
    %v221 = vsub.f32 %v220, %v83
    %vm222 = vcmp.gt.f32.partialorder %v221, 0.0
    %v223 = vsel %vm222, 1, 0
    %v224 = vcvt.s32.f32 %v223
    %v225 = vpack.c.bf16 %v224, %v224
    %v227 = vsel %vm100, %v225, 0
    %229 = vmatpush.bf16.msra.mxu0 0
    %230 = vmatpush.bf16.msra.mxu0 0
    %231 = vmatpush.bf16.msra.mxu0 0
    %232 = vmatpush.bf16.msra.mxu0 0
    %233 = vmatpush.bf16.msra.mxu0 0
    %234 = vmatpush.bf16.msra.mxu0 0
    %235 = vmatpush.bf16.msra.mxu0 %v48
    %236 = vmatpush.bf16.msra.mxu0 %v47
    %237 = vmatmul.bf16.gmra.mxu0 %v227
    %v238 = vpop.f32.mrf.mxu0
    %v239 = vadd.f32 %v67, %v238
    %v240 = vpop.f32.mrf.mxu0
    %241 = vdwg.mxu0
    %v242 = vmul.f32 %v75, %v182
    %v243 = vadd.f32 %v242, %v239
    %v244 = vmul.f32 %v186, %v85
    %v245 = vsub.f32 %v243, %v244
    %v246 = vsub.f32 %v245, %v85
    %vm247 = vcmp.gt.f32.partialorder %v246, 0.0
    %v248 = vsel %vm247, 1, 0
    %v249 = vcvt.s32.f32 %v248
    %v250 = vpack.c.bf16 %v249, %v249
    %v252 = vsel %vm100, %v250, 0
    %254 = vmatpush.bf16.msra.mxu0 0
    %255 = vmatpush.bf16.msra.mxu0 0
    %256 = vmatpush.bf16.msra.mxu0 0
    %257 = vmatpush.bf16.msra.mxu0 0
    %258 = vmatpush.bf16.msra.mxu0 0
    %259 = vmatpush.bf16.msra.mxu0 0
    %260 = vmatpush.bf16.msra.mxu0 %v55
    %261 = vmatpush.bf16.msra.mxu0 %v54
    %262 = vmatmul.bf16.gmra.mxu0 %v252
    %v263 = vpop.f32.mrf.mxu0
    %v264 = vadd.f32 %v69, %v263
    %v265 = vpop.f32.mrf.mxu0
    %266 = vdwg.mxu0
    %v267 = vmul.f32 %v77, %v207
    %v268 = vadd.f32 %v267, %v264
    %v269 = vmul.f32 %v211, %v87
    %v270 = vsub.f32 %v268, %v269
    %v271 = vsub.f32 %v270, %v87
    %vm272 = vcmp.gt.f32.partialorder %v271, 0.0
    %v273 = vsel %vm272, 1, 0
    %v274 = vcvt.s32.f32 %v273
    %s275 = scalar_lea.vmem [#allocation2], 16
    %276 = vst.msk [vmem:[%s275] sm:$0xff] %vm100, %v270
    %v277 = vadd.f32 %v214, %v249
    %s278 = scalar_lea.vmem %s0, 24
    %v279 = vld [vmem:[%s278] sm:$0xff]
    %v280 = vmul.f32 %v73, %v220
    %v281 = vadd.f32 %v280, %v279
    %v282 = vmul.f32 %v224, %v83
    %v283 = vsub.f32 %v281, %v282
    %v284 = vsub.f32 %v283, %v83
    %vm285 = vcmp.gt.f32.partialorder %v284, 0.0
    %v286 = vsel %vm285, 1, 0
    %v287 = vcvt.s32.f32 %v286
    %v288 = vpack.c.bf16 %v287, %v287
    %v290 = vsel %vm100, %v288, 0
    %292 = vmatpush.bf16.msra.mxu0 0
    %293 = vmatpush.bf16.msra.mxu0 0
    %294 = vmatpush.bf16.msra.mxu0 0
    %295 = vmatpush.bf16.msra.mxu0 0
    %296 = vmatpush.bf16.msra.mxu0 0
    %297 = vmatpush.bf16.msra.mxu0 0
    %298 = vmatpush.bf16.msra.mxu0 %v48
    %299 = vmatpush.bf16.msra.mxu0 %v47
    %300 = vmatmul.bf16.gmra.mxu0 %v290
    %v301 = vpop.f32.mrf.mxu0
    %v302 = vadd.f32 %v67, %v301
    %v303 = vpop.f32.mrf.mxu0
    %304 = vdwg.mxu0
    %v305 = vmul.f32 %v75, %v245
    %v306 = vadd.f32 %v305, %v302
    %v307 = vmul.f32 %v249, %v85
    %v308 = vsub.f32 %v306, %v307
    %v309 = vsub.f32 %v308, %v85
    %vm310 = vcmp.gt.f32.partialorder %v309, 0.0
    %v311 = vsel %vm310, 1, 0
    %v312 = vcvt.s32.f32 %v311
    %v313 = vpack.c.bf16 %v312, %v312
    %v315 = vsel %vm100, %v313, 0
    %317 = vmatpush.bf16.msra.mxu0 0
    %318 = vmatpush.bf16.msra.mxu0 0
    %319 = vmatpush.bf16.msra.mxu0 0
    %320 = vmatpush.bf16.msra.mxu0 0
    %321 = vmatpush.bf16.msra.mxu0 0
    %322 = vmatpush.bf16.msra.mxu0 0
    %323 = vmatpush.bf16.msra.mxu0 %v55
    %324 = vmatpush.bf16.msra.mxu0 %v54
    %325 = vmatmul.bf16.gmra.mxu0 %v315
    %v326 = vpop.f32.mrf.mxu0
    %v327 = vadd.f32 %v69, %v326
    %v328 = vpop.f32.mrf.mxu0
    %329 = vdwg.mxu0
    %v330 = vmul.f32 %v77, %v270
    %v331 = vadd.f32 %v330, %v327
    %v332 = vmul.f32 %v274, %v87
    %v333 = vsub.f32 %v331, %v332
    %v334 = vsub.f32 %v333, %v87
    %vm335 = vcmp.gt.f32.partialorder %v334, 0.0
    %v336 = vsel %vm335, 1, 0
    %v337 = vcvt.s32.f32 %v336
    %s338 = scalar_lea.vmem [#allocation2], 24
    %339 = vst.msk [vmem:[%s338] sm:$0xff] %vm100, %v333
    %v340 = vadd.f32 %v277, %v312
    %s341 = scalar_lea.vmem %s0, 32
    %v342 = vld [vmem:[%s341] sm:$0xff]
    %v343 = vmul.f32 %v73, %v283
    %v344 = vadd.f32 %v343, %v342
    %v345 = vmul.f32 %v287, %v83
    %v346 = vsub.f32 %v344, %v345
    %v347 = vsub.f32 %v346, %v83
    %vm348 = vcmp.gt.f32.partialorder %v347, 0.0
    %v349 = vsel %vm348, 1, 0
    %v350 = vcvt.s32.f32 %v349
    %v351 = vpack.c.bf16 %v350, %v350
    %v353 = vsel %vm100, %v351, 0
    %355 = vmatpush.bf16.msra.mxu0 0
    %356 = vmatpush.bf16.msra.mxu0 0
    %357 = vmatpush.bf16.msra.mxu0 0
    %358 = vmatpush.bf16.msra.mxu0 0
    %359 = vmatpush.bf16.msra.mxu0 0
    %360 = vmatpush.bf16.msra.mxu0 0
    %361 = vmatpush.bf16.msra.mxu0 %v48
    %362 = vmatpush.bf16.msra.mxu0 %v47
    %363 = vmatmul.bf16.gmra.mxu0 %v353
    %v364 = vpop.f32.mrf.mxu0
    %v365 = vadd.f32 %v67, %v364
    %v366 = vpop.f32.mrf.mxu0
    %367 = vdwg.mxu0
    %v368 = vmul.f32 %v75, %v308
    %v369 = vadd.f32 %v368, %v365
    %v370 = vmul.f32 %v312, %v85
    %v371 = vsub.f32 %v369, %v370
    %v372 = vsub.f32 %v371, %v85
    %vm373 = vcmp.gt.f32.partialorder %v372, 0.0
    %v374 = vsel %vm373, 1, 0
    %v375 = vcvt.s32.f32 %v374
    %v376 = vpack.c.bf16 %v375, %v375
    %v378 = vsel %vm100, %v376, 0
    %380 = vmatpush.bf16.msra.mxu0 0
    %381 = vmatpush.bf16.msra.mxu0 0
    %382 = vmatpush.bf16.msra.mxu0 0
    %383 = vmatpush.bf16.msra.mxu0 0
    %384 = vmatpush.bf16.msra.mxu0 0
    %385 = vmatpush.bf16.msra.mxu0 0
    %386 = vmatpush.bf16.msra.mxu0 %v55
    %387 = vmatpush.bf16.msra.mxu0 %v54
    %388 = vmatmul.bf16.gmra.mxu0 %v378
    %v389 = vpop.f32.mrf.mxu0
    %v390 = vadd.f32 %v69, %v389
    %v391 = vpop.f32.mrf.mxu0
    %392 = vdwg.mxu0
    %v393 = vmul.f32 %v77, %v333
    %v394 = vadd.f32 %v393, %v390
    %v395 = vmul.f32 %v337, %v87
    %v396 = vsub.f32 %v394, %v395
    %v397 = vsub.f32 %v396, %v87
    %vm398 = vcmp.gt.f32.partialorder %v397, 0.0
    %v399 = vsel %vm398, 1, 0
    %v400 = vcvt.s32.f32 %v399
    %s401 = scalar_lea.vmem [#allocation2], 32
    %402 = vst.msk [vmem:[%s401] sm:$0xff] %vm100, %v396
    %v403 = vadd.f32 %v340, %v375
    %s404 = scalar_lea.vmem %s0, 40
    %v405 = vld [vmem:[%s404] sm:$0xff]
    %v406 = vmul.f32 %v73, %v346
    %v407 = vadd.f32 %v406, %v405
    %v408 = vmul.f32 %v350, %v83
    %v409 = vsub.f32 %v407, %v408
    %v410 = vsub.f32 %v409, %v83
    %vm411 = vcmp.gt.f32.partialorder %v410, 0.0
    %v412 = vsel %vm411, 1, 0
    %v413 = vcvt.s32.f32 %v412
    %v414 = vpack.c.bf16 %v413, %v413
    %v416 = vsel %vm100, %v414, 0
    %418 = vmatpush.bf16.msra.mxu0 0
    %419 = vmatpush.bf16.msra.mxu0 0
    %420 = vmatpush.bf16.msra.mxu0 0
    %421 = vmatpush.bf16.msra.mxu0 0
    %422 = vmatpush.bf16.msra.mxu0 0
    %423 = vmatpush.bf16.msra.mxu0 0
    %424 = vmatpush.bf16.msra.mxu0 %v48
    %425 = vmatpush.bf16.msra.mxu0 %v47
    %426 = vmatmul.bf16.gmra.mxu0 %v416
    %v427 = vpop.f32.mrf.mxu0
    %v428 = vadd.f32 %v67, %v427
    %v429 = vpop.f32.mrf.mxu0
    %430 = vdwg.mxu0
    %v431 = vmul.f32 %v75, %v371
    %v432 = vadd.f32 %v431, %v428
    %v433 = vmul.f32 %v375, %v85
    %v434 = vsub.f32 %v432, %v433
    %v435 = vsub.f32 %v434, %v85
    %vm436 = vcmp.gt.f32.partialorder %v435, 0.0
    %v437 = vsel %vm436, 1, 0
    %v438 = vcvt.s32.f32 %v437
    %v439 = vpack.c.bf16 %v438, %v438
    %v441 = vsel %vm100, %v439, 0
    %443 = vmatpush.bf16.msra.mxu0 0
    %444 = vmatpush.bf16.msra.mxu0 0
    %445 = vmatpush.bf16.msra.mxu0 0
    %446 = vmatpush.bf16.msra.mxu0 0
    %447 = vmatpush.bf16.msra.mxu0 0
    %448 = vmatpush.bf16.msra.mxu0 0
    %449 = vmatpush.bf16.msra.mxu0 %v55
    %450 = vmatpush.bf16.msra.mxu0 %v54
    %451 = vmatmul.bf16.gmra.mxu0 %v441
    %v452 = vpop.f32.mrf.mxu0
    %v453 = vadd.f32 %v69, %v452
    %v454 = vpop.f32.mrf.mxu0
    %455 = vdwg.mxu0
    %v456 = vmul.f32 %v77, %v396
    %v457 = vadd.f32 %v456, %v453
    %v458 = vmul.f32 %v400, %v87
    %v459 = vsub.f32 %v457, %v458
    %v460 = vsub.f32 %v459, %v87
    %vm461 = vcmp.gt.f32.partialorder %v460, 0.0
    %v462 = vsel %vm461, 1, 0
    %v463 = vcvt.s32.f32 %v462
    %s464 = scalar_lea.vmem [#allocation2], 40
    %465 = vst.msk [vmem:[%s464] sm:$0xff] %vm100, %v459
    %v466 = vadd.f32 %v403, %v438
    %s467 = scalar_lea.vmem %s0, 48
    %v468 = vld [vmem:[%s467] sm:$0xff]
    %v469 = vmul.f32 %v73, %v409
    %v470 = vadd.f32 %v469, %v468
    %v471 = vmul.f32 %v413, %v83
    %v472 = vsub.f32 %v470, %v471
    %v473 = vsub.f32 %v472, %v83
    %vm474 = vcmp.gt.f32.partialorder %v473, 0.0
    %v475 = vsel %vm474, 1, 0
    %v476 = vcvt.s32.f32 %v475
    %v477 = vpack.c.bf16 %v476, %v476
    %v479 = vsel %vm100, %v477, 0
    %481 = vmatpush.bf16.msra.mxu0 0
    %482 = vmatpush.bf16.msra.mxu0 0
    %483 = vmatpush.bf16.msra.mxu0 0
    %484 = vmatpush.bf16.msra.mxu0 0
    %485 = vmatpush.bf16.msra.mxu0 0
    %486 = vmatpush.bf16.msra.mxu0 0
    %487 = vmatpush.bf16.msra.mxu0 %v48
    %488 = vmatpush.bf16.msra.mxu0 %v47
    %489 = vmatmul.bf16.gmra.mxu0 %v479
    %v490 = vpop.f32.mrf.mxu0
    %v491 = vadd.f32 %v67, %v490
    %v492 = vpop.f32.mrf.mxu0
    %493 = vdwg.mxu0
    %v494 = vmul.f32 %v75, %v434
    %v495 = vadd.f32 %v494, %v491
    %v496 = vmul.f32 %v438, %v85
    %v497 = vsub.f32 %v495, %v496
    %v498 = vsub.f32 %v497, %v85
    %vm499 = vcmp.gt.f32.partialorder %v498, 0.0
    %v500 = vsel %vm499, 1, 0
    %v501 = vcvt.s32.f32 %v500
    %v502 = vpack.c.bf16 %v501, %v501
    %v504 = vsel %vm100, %v502, 0
    %506 = vmatpush.bf16.msra.mxu0 0
    %507 = vmatpush.bf16.msra.mxu0 0
    %508 = vmatpush.bf16.msra.mxu0 0
    %509 = vmatpush.bf16.msra.mxu0 0
    %510 = vmatpush.bf16.msra.mxu0 0
    %511 = vmatpush.bf16.msra.mxu0 0
    %512 = vmatpush.bf16.msra.mxu0 %v55
    %513 = vmatpush.bf16.msra.mxu0 %v54
    %514 = vmatmul.bf16.gmra.mxu0 %v504
    %v515 = vpop.f32.mrf.mxu0
    %v516 = vadd.f32 %v69, %v515
    %v517 = vpop.f32.mrf.mxu0
    %518 = vdwg.mxu0
    %v519 = vmul.f32 %v77, %v459
    %v520 = vadd.f32 %v519, %v516
    %v521 = vmul.f32 %v463, %v87
    %v522 = vsub.f32 %v520, %v521
    %v523 = vsub.f32 %v522, %v87
    %vm524 = vcmp.gt.f32.partialorder %v523, 0.0
    %v525 = vsel %vm524, 1, 0
    %v526 = vcvt.s32.f32 %v525
    %s527 = scalar_lea.vmem [#allocation2], 48
    %528 = vst.msk [vmem:[%s527] sm:$0xff] %vm100, %v522
    %v529 = vadd.f32 %v466, %v501
    %s530 = scalar_lea.vmem %s0, 56
    %v531 = vld [vmem:[%s530] sm:$0xff]
    %v532 = vmul.f32 %v73, %v472
    %v533 = vadd.f32 %v532, %v531
    %v534 = vmul.f32 %v476, %v83
    %v535 = vsub.f32 %v533, %v534
    %v536 = vsub.f32 %v535, %v83
    %vm537 = vcmp.gt.f32.partialorder %v536, 0.0
    %v538 = vsel %vm537, 1, 0
    %v539 = vcvt.s32.f32 %v538
    %v540 = vpack.c.bf16 %v539, %v539
    %v542 = vsel %vm100, %v540, 0
    %544 = vmatpush.bf16.msra.mxu0 0
    %545 = vmatpush.bf16.msra.mxu0 0
    %546 = vmatpush.bf16.msra.mxu0 0
    %547 = vmatpush.bf16.msra.mxu0 0
    %548 = vmatpush.bf16.msra.mxu0 0
    %549 = vmatpush.bf16.msra.mxu0 0
    %550 = vmatpush.bf16.msra.mxu0 %v48
    %551 = vmatpush.bf16.msra.mxu0 %v47
    %552 = vmatmul.bf16.gmra.mxu0 %v542
    %v553 = vpop.f32.mrf.mxu0
    %v554 = vadd.f32 %v67, %v553
    %v555 = vpop.f32.mrf.mxu0
    %556 = vdwg.mxu0
    %v557 = vmul.f32 %v75, %v497
    %v558 = vadd.f32 %v557, %v554
    %v559 = vmul.f32 %v501, %v85
    %v560 = vsub.f32 %v558, %v559
    %v561 = vsub.f32 %v560, %v85
    %vm562 = vcmp.gt.f32.partialorder %v561, 0.0
    %v563 = vsel %vm562, 1, 0
    %v564 = vcvt.s32.f32 %v563
    %v565 = vpack.c.bf16 %v564, %v564
    %v567 = vsel %vm100, %v565, 0
    %569 = vmatpush.bf16.msra.mxu0 0
    %570 = vmatpush.bf16.msra.mxu0 0
    %571 = vmatpush.bf16.msra.mxu0 0
    %572 = vmatpush.bf16.msra.mxu0 0
    %573 = vmatpush.bf16.msra.mxu0 0
    %574 = vmatpush.bf16.msra.mxu0 0
    %575 = vmatpush.bf16.msra.mxu0 %v55
    %576 = vmatpush.bf16.msra.mxu0 %v54
    %577 = vmatmul.bf16.gmra.mxu0 %v567
    %v578 = vpop.f32.mrf.mxu0
    %v579 = vadd.f32 %v69, %v578
    %v580 = vpop.f32.mrf.mxu0
    %581 = vdwg.mxu0
    %v582 = vmul.f32 %v77, %v522
    %v583 = vadd.f32 %v582, %v579
    %v584 = vmul.f32 %v526, %v87
    %v585 = vsub.f32 %v583, %v584
    %s586 = scalar_lea.vmem [#allocation2], 56
    %587 = vst.msk [vmem:[%s586] sm:$0xff] %vm100, %v585
    %v588 = vadd.f32 %v529, %v564
    %589 = vst.msk [vmem:[%s8] sm:$0xff] %vm100, %v588
    %v590 = vld [vmem:[#allocation2] sm:$0xff]
    %v591 = vld [vmem:[#allocation2 + $0x8] sm:$0xff]
    %v592 = vld [vmem:[#allocation2 + $0x10] sm:$0xff]
    %v593 = vld [vmem:[#allocation2 + $0x18] sm:$0xff]
    %v594 = vld [vmem:[#allocation2 + $0x20] sm:$0xff]
    %v595 = vld [vmem:[#allocation2 + $0x28] sm:$0xff]
    %v596 = vld [vmem:[#allocation2 + $0x30] sm:$0xff]
    %v597 = vld [vmem:[#allocation2 + $0x38] sm:$0xff]
    %v598 = vperm.slane %v70, 0
    %v600 = vsel %vm100, %v590, 0
    %v603 = vsel %vm100, %v591, 0
    %v606 = vsel %vm100, %v592, 0
    %v609 = vsel %vm100, %v593, 0
    %v612 = vsel %vm100, %v594, 0
    %v615 = vsel %vm100, %v595, 0
    %v618 = vsel %vm100, %v596, 0
    %v621 = vsel %vm100, %v597, 0
    %623 = vmatpush.msra.mxu0 0.0
    %624 = vmatpush.msra.mxu0 0.0
    %625 = vmatpush.msra.mxu0 0.0
    %626 = vmatpush.msra.mxu0 0.0
    %627 = vmatpush.msra.mxu0 0.0
    %628 = vmatpush.msra.mxu0 0.0
    %629 = vmatpush.msra.mxu0 0.0
    %630 = vmatpush.msra.mxu0 0.0
    %631 = vmatpush.msra.mxu0 0.0
    %632 = vmatpush.msra.mxu0 0.0
    %633 = vmatpush.msra.mxu0 0.0
    %634 = vmatpush.msra.mxu0 0.0
    %635 = vmatpush.msra.mxu0 %v60
    %636 = vmatpush.msra.mxu0 %v59
    %637 = vmatpush.msra.mxu0 %v58
    %638 = vmatpush.msra.mxu0 %v57
    %639 = vmatmul.f32.gmra.mxu0 %v600
    %v640 = vpop.f32.mrf.mxu0
    %v641 = vadd.f32 %v598, %v640
    %642 = vmatmul.f32.gmra.mxu0 %v603
    %v643 = vpop.f32.mrf.mxu0
    %v644 = vadd.f32 %v598, %v643
    %645 = vmatmul.f32.gmra.mxu0 %v606
    %v646 = vpop.f32.mrf.mxu0
    %v647 = vadd.f32 %v598, %v646
    %648 = vmatmul.f32.gmra.mxu0 %v609
    %v649 = vpop.f32.mrf.mxu0
    %v650 = vadd.f32 %v598, %v649
    %651 = vmatmul.f32.gmra.mxu0 %v612
    %v652 = vpop.f32.mrf.mxu0
    %v653 = vadd.f32 %v598, %v652
    %654 = vmatmul.f32.gmra.mxu0 %v615
    %v655 = vpop.f32.mrf.mxu0
    %v656 = vadd.f32 %v598, %v655
    %657 = vmatmul.f32.gmra.mxu0 %v618
    %v658 = vpop.f32.mrf.mxu0
    %v659 = vadd.f32 %v598, %v658
    %660 = vmatmul.f32.gmra.mxu0 %v621
    %v661 = vpop.f32.mrf.mxu0
    %v662 = vadd.f32 %v598, %v661
    %663 = vdwg.mxu0
    %v664 = vmul.f32 %v79, 0.0
    %v665 = vadd.f32 %v664, %v641
    %v666 = vmul.f32 %v79, %v665
    %v667 = vadd.f32 %v666, %v644
    %v668 = vmul.f32 %v79, %v667
    %v669 = vadd.f32 %v668, %v647
    %v670 = vmul.f32 %v79, %v669
    %v671 = vadd.f32 %v670, %v650
    %v672 = vmul.f32 %v79, %v671
    %v673 = vadd.f32 %v672, %v653
    %v674 = vmul.f32 %v79, %v673
    %v675 = vadd.f32 %v674, %v656
    %v676 = vmul.f32 %v79, %v675
    %v677 = vadd.f32 %v676, %v659
    %v678 = vmul.f32 %v79, %v677
    %v679 = vadd.f32 %v678, %v662
    %v680 = vperm.slane %v71, 0
    %v682 = vsel %vm100, %v665, 0
    %v685 = vsel %vm100, %v667, 0
    %v688 = vsel %vm100, %v669, 0
    %v691 = vsel %vm100, %v671, 0
    %v694 = vsel %vm100, %v673, 0
    %v697 = vsel %vm100, %v675, 0
    %v700 = vsel %vm100, %v677, 0
    %v703 = vsel %vm100, %v679, 0
    %705 = vmatpush.msra.mxu0 0.0
    %706 = vmatpush.msra.mxu0 0.0
    %707 = vmatpush.msra.mxu0 0.0
    %708 = vmatpush.msra.mxu0 0.0
    %709 = vmatpush.msra.mxu0 0.0
    %710 = vmatpush.msra.mxu0 0.0
    %711 = vmatpush.msra.mxu0 0.0
    %712 = vmatpush.msra.mxu0 0.0
    %713 = vmatpush.msra.mxu0 0.0
    %714 = vmatpush.msra.mxu0 0.0
    %715 = vmatpush.msra.mxu0 0.0
    %716 = vmatpush.msra.mxu0 0.0
    %717 = vmatpush.msra.mxu0 %v65
    %718 = vmatpush.msra.mxu0 %v64
    %719 = vmatpush.msra.mxu0 %v63
    %720 = vmatpush.msra.mxu0 %v62
    %721 = vmatmul.f32.gmra.mxu0 %v682
    %v722 = vpop.f32.mrf.mxu0
    %v723 = vadd.f32 %v680, %v722
    %724 = vmatmul.f32.gmra.mxu0 %v685
    %v725 = vpop.f32.mrf.mxu0
    %v726 = vadd.f32 %v680, %v725
    %727 = vmatmul.f32.gmra.mxu0 %v688
    %v728 = vpop.f32.mrf.mxu0
    %v729 = vadd.f32 %v680, %v728
    %730 = vmatmul.f32.gmra.mxu0 %v691
    %v731 = vpop.f32.mrf.mxu0
    %v732 = vadd.f32 %v680, %v731
    %733 = vmatmul.f32.gmra.mxu0 %v694
    %v734 = vpop.f32.mrf.mxu0
    %v735 = vadd.f32 %v680, %v734
    %736 = vmatmul.f32.gmra.mxu0 %v697
    %v737 = vpop.f32.mrf.mxu0
    %v738 = vadd.f32 %v680, %v737
    %739 = vmatmul.f32.gmra.mxu0 %v700
    %v740 = vpop.f32.mrf.mxu0
    %v741 = vadd.f32 %v680, %v740
    %742 = vmatmul.f32.gmra.mxu0 %v703
    %v743 = vpop.f32.mrf.mxu0
    %v744 = vadd.f32 %v680, %v743
    %745 = vdwg.mxu0
    %746 = vst.msk [vmem:[#allocation6] sm:$0xff] %vm100, %v723
    %747 = vst.msk [vmem:[#allocation6 + $0x8] sm:$0xff] %vm100, %v726
    %748 = vst.msk [vmem:[#allocation6 + $0x10] sm:$0xff] %vm100, %v729
    %749 = vst.msk [vmem:[#allocation6 + $0x18] sm:$0xff] %vm100, %v732
    %750 = vst.msk [vmem:[#allocation6 + $0x20] sm:$0xff] %vm100, %v735
    %751 = vst.msk [vmem:[#allocation6 + $0x28] sm:$0xff] %vm100, %v738
    %752 = vst.msk [vmem:[#allocation6 + $0x30] sm:$0xff] %vm100, %v741
    %753 = vst.msk [vmem:[#allocation6 + $0x38] sm:$0xff] %vm100, %v744
    %v754 = vmul.f32 %v81, 0.0
    %v755 = vadd.f32 %v754, %v723
    %v756 = vsub.f32 %v755, %v89
    %vm757 = vcmp.gt.f32.partialorder %v756, 0.0
    %v758 = vsel %vm757, 1, 0
    %v759 = vcvt.s32.f32 %v758
    %v760 = vmul.f32 %v81, %v755
    %v761 = vadd.f32 %v760, %v726
    %v762 = vsub.f32 %v761, %v89
    %vm763 = vcmp.gt.f32.partialorder %v762, 0.0
    %v764 = vsel %vm763, 1, 0
    %v765 = vcvt.s32.f32 %v764
    %v766 = vmul.f32 %v81, %v761
    %v767 = vadd.f32 %v766, %v729
    %v768 = vsub.f32 %v767, %v89
    %vm769 = vcmp.gt.f32.partialorder %v768, 0.0
    %v770 = vsel %vm769, 1, 0
    %v771 = vcvt.s32.f32 %v770
    %v772 = vmul.f32 %v81, %v767
    %v773 = vadd.f32 %v772, %v732
    %v774 = vsub.f32 %v773, %v89
    %vm775 = vcmp.gt.f32.partialorder %v774, 0.0
    %v776 = vsel %vm775, 1, 0
    %v777 = vcvt.s32.f32 %v776
    %v778 = vmul.f32 %v81, %v773
    %v779 = vadd.f32 %v778, %v735
    %v780 = vsub.f32 %v779, %v89
    %vm781 = vcmp.gt.f32.partialorder %v780, 0.0
    %v782 = vsel %vm781, 1, 0
    %v783 = vcvt.s32.f32 %v782
    %v784 = vmul.f32 %v81, %v779
    %v785 = vadd.f32 %v784, %v738
    %v786 = vsub.f32 %v785, %v89
    %vm787 = vcmp.gt.f32.partialorder %v786, 0.0
    %v788 = vsel %vm787, 1, 0
    %v789 = vcvt.s32.f32 %v788
    %v790 = vmul.f32 %v81, %v785
    %v791 = vadd.f32 %v790, %v741
    %v792 = vsub.f32 %v791, %v89
    %vm793 = vcmp.gt.f32.partialorder %v792, 0.0
    %v794 = vsel %vm793, 1, 0
    %v795 = vcvt.s32.f32 %v794
    %v796 = vmul.f32 %v81, %v791
    %v797 = vadd.f32 %v796, %v744
    %v798 = vsub.f32 %v797, %v89
    %vm799 = vcmp.gt.f32.partialorder %v798, 0.0
    %v800 = vsel %vm799, 1, 0
    %v801 = vcvt.s32.f32 %v800
    %802 = vst.msk [vmem:[%s7] sm:$0xff] %vm100, %v755
    %803 = vst.msk [vmem:[%s7 + $0x8] sm:$0xff] %vm100, %v761
    %804 = vst.msk [vmem:[%s7 + $0x10] sm:$0xff] %vm100, %v767
    %805 = vst.msk [vmem:[%s7 + $0x18] sm:$0xff] %vm100, %v773
    %806 = vst.msk [vmem:[%s7 + $0x20] sm:$0xff] %vm100, %v779
    %807 = vst.msk [vmem:[%s7 + $0x28] sm:$0xff] %vm100, %v785
    %808 = vst.msk [vmem:[%s7 + $0x30] sm:$0xff] %vm100, %v791
    %809 = vst.msk [vmem:[%s7 + $0x38] sm:$0xff] %vm100, %v797
    %810 = vst.msk [vmem:[#allocation7] sm:$0xff] %vm100, %v759
    %811 = vst.msk [vmem:[#allocation7 + $0x8] sm:$0xff] %vm100, %v765
    %812 = vst.msk [vmem:[#allocation7 + $0x10] sm:$0xff] %vm100, %v771
    %813 = vst.msk [vmem:[#allocation7 + $0x18] sm:$0xff] %vm100, %v777
    %814 = vst.msk [vmem:[#allocation7 + $0x20] sm:$0xff] %vm100, %v783
    %815 = vst.msk [vmem:[#allocation7 + $0x28] sm:$0xff] %vm100, %v789
    %816 = vst.msk [vmem:[#allocation7 + $0x30] sm:$0xff] %vm100, %v795
    %817 = vst.msk [vmem:[#allocation7 + $0x38] sm:$0xff] %vm100, %v801
    // Predicated region
    $region26: #{rlif_forward.1} parent=1 // pred_check
      _
    $region27: #{rlif_forward.1} parent=1 // pred_check_branch
      %819 = sbr.rel (0) target = $region29
    $region28: #{rlif_forward.1} parent=1 // pred_region
      %821 = vsyncadd [#allocation5], 0
      %s822 = sshll.u32 [#allocation6], 4
      %s823 = int_to_ptr.vmem [resolvable:$true] %s822
      %s824 = sshll.u32 %s5, 4
      %s825 = int_to_ptr.hbm [resolvable:$true] %s824
      %830 = dma.vmem_to_hbm [thread:$0]  %s823, 1024, %s825, [#allocation5], 128, 128, 8
    $region29: #{rlif_forward.1} parent=1 // pred_fallthru
      _
    // Predicated region
    $region30: #{rlif_forward.1} parent=1 // pred_check
      _
    $region31: #{rlif_forward.1} parent=1 // pred_check_branch
      %832 = sbr.rel (0) target = $region33
    $region32: #{rlif_forward.1} parent=1 // pred_region
      %834 = vsyncadd [#allocation8], 0
      %s835 = sshll.u32 [#allocation7], 4
      %s836 = int_to_ptr.vmem [resolvable:$true] %s835
      %s837 = sshll.u32 %s6, 4
      %s838 = int_to_ptr.hbm [resolvable:$true] %s837
      %843 = dma.vmem_to_hbm [thread:$0]  %s836, 1024, %s838, [#allocation8], 128, 128, 8
    $region33: #{rlif_forward.1} parent=1 // pred_fallthru
      _
    // Predicated region
    $region34: #{rlif_forward.1} parent=1 // pred_check
      _
    $region35: #{rlif_forward.1} parent=1 // pred_check_branch
      %845 = sbr.rel (0) target = $region37
    $region36: #{rlif_forward.1} parent=1 // pred_region
      _
    $region37: #{rlif_forward.1} parent=1 // pred_fallthru
      _
    // Predicated region
    $region38: #{rlif_forward.1} parent=1 // pred_check
      _
    $region39: #{rlif_forward.1} parent=1 // pred_check_branch
      %847 = sbr.rel (0) target = $region41
    $region40: #{rlif_forward.1} parent=1 // pred_region
      _
    $region41: #{rlif_forward.1} parent=1 // pred_fallthru
      _
    // Predicated region
    $region42: #{rlif_forward.1} parent=1 // pred_check
      _
    $region43: #{rlif_forward.1} parent=1 // pred_check_branch
      %849 = sbr.rel (0) target = $region45
    $region44: #{rlif_forward.1} parent=1 // pred_region
      %851 = dma.done [#allocation5], 1024
    $region45: #{rlif_forward.1} parent=1 // pred_fallthru
      _
    // Predicated region
    $region46: #{rlif_forward.1} parent=1 // pred_check
      _
    $region47: #{rlif_forward.1} parent=1 // pred_check_branch
      %853 = sbr.rel (0) target = $region49
    $region48: #{rlif_forward.1} parent=1 // pred_region
      %855 = dma.done [#allocation8], 1024
    $region49: #{rlif_forward.1} parent=1 // pred_fallthru
      _
    // Predicated region
    $region50: #{rlif_forward.1} parent=1 // pred_check
      _
    $region51: #{rlif_forward.1} parent=1 // pred_check_branch
      %857 = sbr.rel (0) target = $region53
    $region52: #{rlif_forward.1} parent=1 // pred_region
      _
    $region53: #{rlif_forward.1} parent=1 // pred_fallthru
      _
    // Predicated region
    $region54: #{rlif_forward.1} parent=1 // pred_check
      _
    $region55: #{rlif_forward.1} parent=1 // pred_check_branch
      %859 = sbr.rel (0) target = $region57
    $region56: #{rlif_forward.1} parent=1 // pred_region
      _
    $region57: #{rlif_forward.1} parent=1 // pred_fallthru
      _
    %860 = vsyncpa [#allocation4], 1
    %861 = vsyncpa [#allocation5], 1
    %862 = vsyncpa [#allocation8], 1

</llo_original>
